<compile_context>
chip_gen: v6e
topology: v6e:2x2x1
jax: 0.10.0
libtpu: 0.0.40
codegen_flags: <defaults>
</compile_context>

<pallas_src>
import math

import jax
import jax.numpy as jnp
from jax.experimental import pallas as pl
from jax.experimental.pallas import tpu as pltpu


def _pick_block(n, cap):
    """Largest block <= cap that keeps Mosaic's (8,128) block rules happy.

    Returns either n itself (full dim) or a multiple-of-8 divisor of n.
    """
    if n <= cap:
        return n
    for t in range(cap, 0, -1):
        if t % 8 == 0 and n % t == 0:
            return t
    return n


# --------------------------------------------------------------------------
# Kernel 1: conv1 (im2col matmul) -> bias -> ReLU -> 2x2 maxpool
# --------------------------------------------------------------------------

def conv_pool_kernel(cols_ref, w_ref, b_ref, o_ref):
    # cols_ref: (Bt, 256, 128) im2col columns (K zero-padded 81->128), rows per
    #           image ordered (pool-group g = 2*ib+jb, ph, pw)
    # w_ref:    (128, 32)  conv1 weight, rows (kh, kw, in_c), rows 81..127 == 0
    # b_ref:    (1, 32)    conv1 bias
    # o_ref:    (Bt, 64, 32) pooled output, row = 8*ph + pw, channels last
    bt = o_ref.shape[0]
    cols = cols_ref[...].reshape(bt * 256, 128)
    y = jnp.dot(cols, w_ref[...], preferred_element_type=jnp.float32)
    y = jnp.maximum(y + b_ref[...], 0.0)                       # (Bt*256, 32)
    # 2x2 / stride-2 max pool: partners are the four contiguous 64-row groups.
    y4 = y.reshape(bt, 4, 64, 32)
    o_ref[...] = jnp.maximum(jnp.maximum(y4[:, 0], y4[:, 1]),
                             jnp.maximum(y4[:, 2], y4[:, 3])).astype(o_ref.dtype)


def conv_pool_apply(cols, wmat, bconv, block_b):
    B = cols.shape[0]
    return pl.pallas_call(
        conv_pool_kernel,
        out_shape=jax.ShapeDtypeStruct((B, 64, 32), jnp.float32),
        grid=(B // block_b,),
        in_specs=[
            pl.BlockSpec((block_b, 256, 128), lambda i: (i, 0, 0)),
            pl.BlockSpec((128, 32), lambda i: (0, 0)),   # resident weights
            pl.BlockSpec((1, 32), lambda i: (0, 0)),
        ],
        out_specs=pl.BlockSpec((block_b, 64, 32), lambda i: (i, 0, 0)),
        compiler_params=pltpu.CompilerParams(
            dimension_semantics=("parallel",)),          # v7x: 2 TCs share batch
    )(cols, wmat, bconv)


# --------------------------------------------------------------------------
# Kernel 2: fc1 -> ReLU -> fc2, fused, batch-tiled
# --------------------------------------------------------------------------

def mlp_kernel(x_ref, w1_ref, b1_ref, w2_ref, b2_ref, o_ref):
    h = jnp.dot(x_ref[...], w1_ref[...], preferred_element_type=jnp.float32)
    h = jnp.maximum(h + b1_ref[...], 0.0)
    y = jnp.dot(h, w2_ref[...], preferred_element_type=jnp.float32)
    o_ref[...] = (y + b2_ref[...]).astype(o_ref.dtype)


def mlp_apply(xflat, w1, b1, w2, b2, block_m):
    B, K = xflat.shape
    O = w2.shape[1]
    return pl.pallas_call(
        mlp_kernel,
        out_shape=jax.ShapeDtypeStruct((B, O), jnp.float32),
        grid=(B // block_m,),
        in_specs=[
            pl.BlockSpec((block_m, K), lambda i: (i, 0)),
            pl.BlockSpec(w1.shape, lambda i: (0, 0)),    # resident weights
            pl.BlockSpec(b1.shape, lambda i: (0, 0)),
            pl.BlockSpec(w2.shape, lambda i: (0, 0)),
            pl.BlockSpec(b2.shape, lambda i: (0, 0)),
        ],
        out_specs=pl.BlockSpec((block_m, O), lambda i: (i, 0)),
        compiler_params=pltpu.CompilerParams(
            dimension_semantics=("parallel",)),
    )(xflat, w1, b1, w2, b2)


# --------------------------------------------------------------------------
# Parameters (synthetic init; kernel-friendly layouts precomputed ONCE)
# --------------------------------------------------------------------------

def init_params(key):
    ks = jax.random.split(key, 6)
    # quanv rand_params: uniform(0, 2*pi, (n_layers=1, filter_size**2=9))
    theta = jax.random.uniform(ks[0], (1, 9), jnp.float32,
                               minval=0.0, maxval=2.0 * math.pi)
    # conv1: Conv2d(9, 32, 3, stride=1, padding=1) -> weight (32, 9, 3, 3)
    wconv = jax.random.normal(ks[1], (32, 9, 3, 3), jnp.float32) / math.sqrt(81)
    bconv = 0.01 * jax.random.normal(ks[2], (32,), jnp.float32)
    # fc1: Linear(32*8*8, 128); fc2: Linear(128, 10)   (PyTorch layouts)
    wfc1 = jax.random.normal(ks[3], (128, 32 * 8 * 8), jnp.float32) \
        / math.sqrt(32 * 8 * 8)
    bfc1 = 0.01 * jax.random.normal(ks[4], (128,), jnp.float32)
    wfc2 = jax.random.normal(ks[5], (10, 128), jnp.float32) / math.sqrt(128)
    bfc2 = jnp.zeros((10,), jnp.float32)
    return dict(theta=theta, wconv=wconv, bconv=bconv,
                wfc1=wfc1, bfc1=bfc1, wfc2=wfc2, bfc2=bfc2)


def prepare_params(raw):
    # conv im2col matrix: rows ordered (kh, kw, in_c), K zero-padded 81 -> 128.
    wconv_mat = raw["wconv"].transpose(2, 3, 1, 0).reshape(81, 32)
    wconv_mat = jnp.pad(wconv_mat, ((0, 128 - 81), (0, 0)))   # pad rows MUST be 0
    # fc1 columns: PyTorch flattens pooled maps as (c, h, w); the kernel flattens
    # as (h, w, c) -> permute once and transpose to (2048, 128).
    wfc1_t = (raw["wfc1"].reshape(128, 32, 8, 8).transpose(0, 2, 3, 1)
              .reshape(128, 2048).T)
    return {
        "theta": raw["theta"],
        "wconv_mat": wconv_mat,
        "bconv": raw["bconv"].reshape(1, 32),
        "wfc1_t": wfc1_t,
        "bfc1": raw["bfc1"].reshape(1, 128),
        "wfc2_t": raw["wfc2"].T,
        "bfc2": raw["bfc2"].reshape(1, 10),
    }


# --------------------------------------------------------------------------
# Forward pass
# --------------------------------------------------------------------------

def forward(x, params, *, conv_block_cap=32, mlp_block_cap=256):
    # x: NCHW (B, 3, 32, 32)
    B, C, H, W = x.shape
    fs, stride, pad = 3, 2, 1
    oh = (H + 2 * pad - fs) // stride + 1            # 16

    # quanv1 patch extraction (stride 2, pad 1). The quantum circuit reads
    # inputs[0:9] of the flattened (C,3,3) patch, i.e. channel 0's 3x3 window.
    x0p = jnp.pad(x[:, 0], ((0, 0), (pad, pad), (pad, pad)))      # (B,34,34)
    patches = jnp.stack(
        [x0p[:, kh:kh + stride * oh:stride, kw:kw + stride * oh:stride]
         for kh in range(fs) for kw in range(fs)], axis=-1)        # (B,16,16,9)
    # TODO(synk): PennyLane RandomLayers (random gate/wire choices + CNOT
    # entanglers) has no deterministic Pallas equivalent; approximated by a
    # per-wire RY(theta_k) rotation (no entanglement): <Z_k> = cos(pi*x_k + theta_k).
    q = jnp.cos(jnp.pi * patches + params["theta"][0])             # (B,16,16,9)

    # conv1 im2col (padding 1), rows per image ordered by 2x2-pool group
    # g = 2*ib + jb then (ph, pw); columns (kh, kw, c) zero-padded 81 -> 128.
    qpad = jnp.pad(q, ((0, 0), (1, 1), (1, 1), (0, 0)))            # (B,18,18,9)
    groups = []
    for ib in range(2):
        for jb in range(2):
            win = jnp.stack(
                [qpad[:, ib + kh:ib + kh + 16:2, jb + kw:jb + kw + 16:2, :]
                 for kh in range(3) for kw in range(3)], axis=3)   # (B,8,8,9,9)
            groups.append(win.reshape(B, 64, 81))
    cols = jnp.concatenate(groups, axis=1)                         # (B,256,81)
    cols = jnp.pad(cols, ((0, 0), (0, 0), (0, 128 - 81)))          # (B,256,128)

    # fused conv1 -> ReLU -> maxpool (one Pallas kernel, batch-tiled grid)
    block_b = _pick_block(B, conv_block_cap)
    pooled = conv_pool_apply(cols, params["wconv_mat"], params["bconv"],
                             block_b)                              # (B,64,32)
    # row = 8*h + w, channels last; contiguous reshape is free in the wrapper.
    xflat = pooled.reshape(B, 64 * 32)

    # fused fc1 -> ReLU -> fc2 (second Pallas kernel, batch-tiled grid)
    block_m = _pick_block(B, mlp_block_cap)
    return mlp_apply(xflat, params["wfc1_t"], params["bfc1"],
                     params["wfc2_t"], params["bfc2"], block_m)


# --------------------------------------------------------------------------
# Pure-JAX reference (same surrogate) for a tolerance check
# --------------------------------------------------------------------------

def reference_forward(x, raw):
    B = x.shape[0]
    hi = jax.lax.Precision.HIGHEST
    x0p = jnp.pad(x[:, 0], ((0, 0), (1, 1), (1, 1)))
    patches = jnp.stack([x0p[:, kh:kh + 32:2, kw:kw + 32:2]
                         for kh in range(3) for kw in range(3)], axis=1)  # (B,9,16,16)
    q = jnp.cos(jnp.pi * patches + raw["theta"][0][:, None, None])
    y = jax.lax.conv_general_dilated(
        q, raw["wconv"], (1, 1), ((1, 1), (1, 1)),
        dimension_numbers=("NCHW", "OIHW", "NCHW"), precision=hi)
    y = jnp.maximum(y + raw["bconv"][None, :, None, None], 0.0)
    p = jax.lax.reduce_window(y, -jnp.inf, jax.lax.max,
                              (1, 1, 2, 2), (1, 1, 2, 2), "VALID")
    f = p.reshape(B, -1)
    h = jnp.maximum(jnp.dot(f, raw["wfc1"].T, precision=hi) + raw["bfc1"], 0.0)
    return jnp.dot(h, raw["wfc2"].T, precision=hi) + raw["bfc2"]


# --------------------------------------------------------------------------

if __name__ == "__main__":
    key = jax.random.PRNGKey(0)
    kx, kp = jax.random.split(key)
    # CIFAR-like input (batch=2, 3 channels, 32x32); 32x32 is required by fc1.
    x = jax.random.uniform(kx, (2, 3, 32, 32), dtype=jnp.float32)
    raw = init_params(kp)
    params = prepare_params(raw)

    out = jax.block_until_ready(jax.jit(forward)(x, params))
    assert out.shape == (2, 10) and out.dtype == jnp.float32

    ref = jax.block_until_ready(reference_forward(x, raw))
    err = float(jnp.max(jnp.abs(out - ref)))
    assert jnp.allclose(out, ref, atol=2e-2, rtol=2e-2), f"max |err| = {err}"

    print("KERNEL_OK")
</pallas_src>

<mosaic_0001>
module attributes {stable_mosaic.version = 11 : i64} {
  func.func @mlp_kernel(%arg0: i32, %arg1: memref<2x2048xf32, #tpu.memory_space<vmem>>, %arg2: memref<2048x128xf32, #tpu.memory_space<vmem>>, %arg3: memref<1x128xf32, #tpu.memory_space<vmem>>, %arg4: memref<128x10xf32, #tpu.memory_space<vmem>>, %arg5: memref<1x10xf32, #tpu.memory_space<vmem>>, %arg6: memref<2x10xf32, #tpu.memory_space<vmem>>) attributes {dimension_semantics = [#tpu.dimension_semantics<parallel>], iteration_bounds = array<i64: 1>, scalar_prefetch = 0 : i64, scratch_operands = 0 : i64, tpu.core_type = #tpu.core_type<tc>, window_params = [{transform_indices = @transform_0, window_bounds = array<i64: 2, 2048>}, {pipeline_mode = #tpu.pipeline_mode<synchronous>, transform_indices = @transform_1, window_bounds = array<i64: 2048, 128>}, {pipeline_mode = #tpu.pipeline_mode<synchronous>, transform_indices = @transform_2, window_bounds = array<i64: 1, 128>}, {pipeline_mode = #tpu.pipeline_mode<synchronous>, transform_indices = @transform_3, window_bounds = array<i64: 128, 10>}, {pipeline_mode = #tpu.pipeline_mode<synchronous>, transform_indices = @transform_4, window_bounds = array<i64: 1, 10>}, {transform_indices = @transform_5, window_bounds = array<i64: 2, 10>}]} {
    %c0 = arith.constant 0 : index
    %c0_0 = arith.constant 0 : index
    %0 = vector.load %arg1[%c0, %c0_0] : memref<2x2048xf32, #tpu.memory_space<vmem>>, vector<2x2048xf32>
    %c0_1 = arith.constant 0 : index
    %c0_2 = arith.constant 0 : index
    %1 = vector.load %arg2[%c0_1, %c0_2] : memref<2048x128xf32, #tpu.memory_space<vmem>>, vector<2048x128xf32>
    %cst = arith.constant dense<0.000000e+00> : vector<2x128xf32>
    %2 = tpu.matmul %0, %1, %cst {dimension_numbers = #tpu.dot_dimension_numbers<[1], [0], [0], [1], [0, 0, 1, 1], [], []>} : vector<2x2048xf32>, vector<2048x128xf32>, vector<2x128xf32> -> vector<2x128xf32>
    %c0_3 = arith.constant 0 : index
    %c0_4 = arith.constant 0 : index
    %3 = vector.load %arg3[%c0_3, %c0_4] : memref<1x128xf32, #tpu.memory_space<vmem>>, vector<1x128xf32>
    %4 = vector.broadcast %3 : vector<1x128xf32> to vector<2x128xf32>
    %5 = arith.addf %2, %4 : vector<2x128xf32>
    %cst_5 = arith.constant 0.000000e+00 : f32
    %6 = vector.broadcast %cst_5 : f32 to vector<2x128xf32>
    %7 = arith.maximumf %5, %6 : vector<2x128xf32>
    %c0_6 = arith.constant 0 : index
    %c0_7 = arith.constant 0 : index
    %8 = vector.load %arg4[%c0_6, %c0_7] : memref<128x10xf32, #tpu.memory_space<vmem>>, vector<128x10xf32>
    %cst_8 = arith.constant dense<0.000000e+00> : vector<2x10xf32>
    %9 = tpu.matmul %7, %8, %cst_8 {dimension_numbers = #tpu.dot_dimension_numbers<[1], [0], [0], [1], [0, 0, 1, 1], [], []>} : vector<2x128xf32>, vector<128x10xf32>, vector<2x10xf32> -> vector<2x10xf32>
    %c0_9 = arith.constant 0 : index
    %c0_10 = arith.constant 0 : index
    %10 = vector.load %arg5[%c0_9, %c0_10] : memref<1x10xf32, #tpu.memory_space<vmem>>, vector<1x10xf32>
    %11 = vector.broadcast %10 : vector<1x10xf32> to vector<2x10xf32>
    %12 = arith.addf %9, %11 : vector<2x10xf32>
    %c0_11 = arith.constant 0 : index
    %c0_12 = arith.constant 0 : index
    %13 = vector.load %arg6[%c0_11, %c0_12] : memref<2x10xf32, #tpu.memory_space<vmem>>, vector<2x10xf32>
    tpu.vector_store %arg6[%c0_11, %c0_12], %12 {strides = array<i32>} : memref<2x10xf32, #tpu.memory_space<vmem>>, vector<2x10xf32>,
    return
  }
  func.func @transform_0(%arg0: i32) -> (i32, i32) {
    %c0_i32 = arith.constant 0 : i32
    %c0_i32_0 = arith.constant 0 : i32
    return %arg0, %c0_i32 : i32, i32
  }
  func.func @transform_1(%arg0: i32) -> (i32, i32) {
    %c0_i32 = arith.constant 0 : i32
    %c0_i32_0 = arith.constant 0 : i32
    %c0_i32_1 = arith.constant 0 : i32
    return %c0_i32, %c0_i32_0 : i32, i32
  }
  func.func @transform_2(%arg0: i32) -> (i32, i32) {
    %c0_i32 = arith.constant 0 : i32
    %c0_i32_0 = arith.constant 0 : i32
    %c0_i32_1 = arith.constant 0 : i32
    return %c0_i32, %c0_i32_0 : i32, i32
  }
  func.func @transform_3(%arg0: i32) -> (i32, i32) {
    %c0_i32 = arith.constant 0 : i32
    %c0_i32_0 = arith.constant 0 : i32
    %c0_i32_1 = arith.constant 0 : i32
    return %c0_i32, %c0_i32_0 : i32, i32
  }
  func.func @transform_4(%arg0: i32) -> (i32, i32) {
    %c0_i32 = arith.constant 0 : i32
    %c0_i32_0 = arith.constant 0 : i32
    %c0_i32_1 = arith.constant 0 : i32
    return %c0_i32, %c0_i32_0 : i32, i32
  }
  func.func @transform_5(%arg0: i32) -> (i32, i32) {
    %c0_i32 = arith.constant 0 : i32
    %c0_i32_0 = arith.constant 0 : i32
    return %arg0, %c0_i32 : i32, i32
  }
}

module attributes {stable_mosaic.version = 11 : i64} {
  func.func @conv_pool_kernel(%arg0: i32, %arg1: memref<2x256x128xf32, #tpu.memory_space<vmem>>, %arg2: memref<128x32xf32, #tpu.memory_space<vmem>>, %arg3: memref<1x32xf32, #tpu.memory_space<vmem>>, %arg4: memref<2x64x32xf32, #tpu.memory_space<vmem>>) attributes {dimension_semantics = [#tpu.dimension_semantics<parallel>], iteration_bounds = array<i64: 1>, scalar_prefetch = 0 : i64, scratch_operands = 0 : i64, tpu.core_type = #tpu.core_type<tc>, window_params = [{transform_indices = @transform_0, window_bounds = array<i64: 2, 256, 128>}, {pipeline_mode = #tpu.pipeline_mode<synchronous>, transform_indices = @transform_1, window_bounds = array<i64: 128, 32>}, {pipeline_mode = #tpu.pipeline_mode<synchronous>, transform_indices = @transform_2, window_bounds = array<i64: 1, 32>}, {transform_indices = @transform_3, window_bounds = array<i64: 2, 64, 32>}]} {
    %c0 = arith.constant 0 : index
    %c0_0 = arith.constant 0 : index
    %c0_1 = arith.constant 0 : index
    %0 = vector.load %arg1[%c0, %c0_0, %c0_1] : memref<2x256x128xf32, #tpu.memory_space<vmem>>, vector<2x256x128xf32>
    %1 = vector.shape_cast %0 : vector<2x256x128xf32> to vector<512x128xf32>
    %c0_2 = arith.constant 0 : index
    %c0_3 = arith.constant 0 : index
    %2 = vector.load %arg2[%c0_2, %c0_3] : memref<128x32xf32, #tpu.memory_space<vmem>>, vector<128x32xf32>
    %cst = arith.constant dense<0.000000e+00> : vector<512x32xf32>
    %3 = tpu.matmul %1, %2, %cst {dimension_numbers = #tpu.dot_dimension_numbers<[1], [0], [0], [1], [0, 0, 1, 1], [], []>} : vector<512x128xf32>, vector<128x32xf32>, vector<512x32xf32> -> vector<512x32xf32>
    %c0_4 = arith.constant 0 : index
    %c0_5 = arith.constant 0 : index
    %4 = vector.load %arg3[%c0_4, %c0_5] : memref<1x32xf32, #tpu.memory_space<vmem>>, vector<1x32xf32>
    %5 = vector.broadcast %4 : vector<1x32xf32> to vector<512x32xf32>
    %6 = arith.addf %3, %5 : vector<512x32xf32>
    %cst_6 = arith.constant 0.000000e+00 : f32
    %7 = vector.broadcast %cst_6 : f32 to vector<512x32xf32>
    %8 = arith.maximumf %6, %7 : vector<512x32xf32>
    %9 = vector.shape_cast %8 : vector<512x32xf32> to vector<2x4x64x32xf32>
    %10 = vector.extract_strided_slice %9 {offsets = [0, 0, 0, 0], sizes = [2, 1, 64, 32], strides = [1, 1, 1, 1]} : vector<2x4x64x32xf32> to vector<2x1x64x32xf32>
    %11 = vector.shape_cast %10 : vector<2x1x64x32xf32> to vector<2x64x32xf32>
    %12 = vector.extract_strided_slice %9 {offsets = [0, 1, 0, 0], sizes = [2, 1, 64, 32], strides = [1, 1, 1, 1]} : vector<2x4x64x32xf32> to vector<2x1x64x32xf32>
    %13 = vector.shape_cast %12 : vector<2x1x64x32xf32> to vector<2x64x32xf32>
    %14 = arith.maximumf %11, %13 : vector<2x64x32xf32>
    %15 = vector.extract_strided_slice %9 {offsets = [0, 2, 0, 0], sizes = [2, 1, 64, 32], strides = [1, 1, 1, 1]} : vector<2x4x64x32xf32> to vector<2x1x64x32xf32>
    %16 = vector.shape_cast %15 : vector<2x1x64x32xf32> to vector<2x64x32xf32>
    %17 = vector.extract_strided_slice %9 {offsets = [0, 3, 0, 0], sizes = [2, 1, 64, 32], strides = [1, 1, 1, 1]} : vector<2x4x64x32xf32> to vector<2x1x64x32xf32>
    %18 = vector.shape_cast %17 : vector<2x1x64x32xf32> to vector<2x64x32xf32>
    %19 = arith.maximumf %16, %18 : vector<2x64x32xf32>
    %20 = arith.maximumf %14, %19 : vector<2x64x32xf32>
    %c0_7 = arith.constant 0 : index
    %c0_8 = arith.constant 0 : index
    %c0_9 = arith.constant 0 : index
    %21 = vector.load %arg4[%c0_7, %c0_8, %c0_9] : memref<2x64x32xf32, #tpu.memory_space<vmem>>, vector<2x64x32xf32>
    tpu.vector_store %arg4[%c0_7, %c0_8, %c0_9], %20 {strides = array<i32>} : memref<2x64x32xf32, #tpu.memory_space<vmem>>, vector<2x64x32xf32>,
    return
  }
  func.func @transform_0(%arg0: i32) -> (i32, i32, i32) {
    %c0_i32 = arith.constant 0 : i32
    %c0_i32_0 = arith.constant 0 : i32
    %c0_i32_1 = arith.constant 0 : i32
    return %arg0, %c0_i32, %c0_i32_0 : i32, i32, i32
  }
  func.func @transform_1(%arg0: i32) -> (i32, i32) {
    %c0_i32 = arith.constant 0 : i32
    %c0_i32_0 = arith.constant 0 : i32
    %c0_i32_1 = arith.constant 0 : i32
    return %c0_i32, %c0_i32_0 : i32, i32
  }
  func.func @transform_2(%arg0: i32) -> (i32, i32) {
    %c0_i32 = arith.constant 0 : i32
    %c0_i32_0 = arith.constant 0 : i32
    %c0_i32_1 = arith.constant 0 : i32
    return %c0_i32, %c0_i32_0 : i32, i32
  }
  func.func @transform_3(%arg0: i32) -> (i32, i32, i32) {
    %c0_i32 = arith.constant 0 : i32
    %c0_i32_0 = arith.constant 0 : i32
    %c0_i32_1 = arith.constant 0 : i32
    return %arg0, %c0_i32, %c0_i32_0 : i32, i32, i32
  }
}

</mosaic_0001>

<llo_original>
// kernel: forward.3
$region0: #{forward.3}
  #allocation0 [shape = 'u32[]', space=smem, size = 0x4, offset = 0x4, fixed_abs, tag = 'smem constant byte address 0x4 - core index']
  #allocation1 [shape = 'u32[144,128]{1,0:T(1,128)}', space=vmem, size = 0x12000, scoped, tag = 'internal scratch']
  %s0 = inlined_call_operand.vmem [shape: f32[2,2048], index: 0, kind: input, shape index: {}]
  %s1 = inlined_call_operand.vmem [shape: f32[2048,128], index: 1, kind: input, shape index: {}]
  %s2 = inlined_call_operand.vmem [shape: f32[1,128], index: 2, kind: input, shape index: {}]
  %s3 = inlined_call_operand.vmem [shape: f32[128,10], index: 3, kind: input, shape index: {}]
  %s4 = inlined_call_operand.vmem [shape: f32[1,10], index: 4, kind: input, shape index: {}]
  %s5 = inlined_call_operand.hbm [shape: f32[2,10], index: 5, kind: output, shape index: {}]
  %s6 = sld [smem:[#allocation0]]
  $region30: #{forward.3} parent=0
    _
  %s8 = ssub.s32 1, %s6
  %s9 = scalar_select 0, %s8, %s6
  $region1: #{forward.3} parent=0
    #allocation2 [shape = 'u8[1024]{0}', space=vmem, size = 0x400, scoped, tag = 'output window, operand 0, single buffered']
    #allocation3 [shape = 's32[1]{0}', space=sflag, size = 0x4, scoped, tag = 'scoped memory for forward.3']
    %10 = vsyncpa [#allocation3], 0
    // Predicated region
    $region2: #{forward.3} parent=1 // pred_check
      _
    $region3: #{forward.3} parent=1 // pred_check_branch
      %12 = sbr.rel (0) target = $region5
    $region4: #{forward.3} parent=1 // pred_region
      _
    $region5: #{forward.3} parent=1 // pred_fallthru
      _
    // Predicated region
    $region6: #{forward.3} parent=1 // pred_check
      _
    $region7: #{forward.3} parent=1 // pred_check_branch
      %14 = sbr.rel (0) target = $region9
    $region8: #{forward.3} parent=1 // pred_region
      _
    $region9: #{forward.3} parent=1 // pred_fallthru
      _
    // Predicated region
    $region10: #{forward.3} parent=1 // pred_check
      _
    $region11: #{forward.3} parent=1 // pred_check_branch
      %16 = sbr.rel (0) target = $region13
    $region12: #{forward.3} parent=1 // pred_region
      _
    $region13: #{forward.3} parent=1 // pred_fallthru
      _
    // Predicated region
    $region14: #{forward.3} parent=1 // pred_check
      _
    $region15: #{forward.3} parent=1 // pred_check_branch
      %18 = sbr.rel (0) target = $region17
    $region16: #{forward.3} parent=1 // pred_region
      _
    $region17: #{forward.3} parent=1 // pred_fallthru
      _
    // Predicated region
    $region18: #{forward.3} parent=1 // pred_check
      _
    $region19: #{forward.3} parent=1 // pred_check_branch
      %20 = sbr.rel (0) target = $region21
    $region20: #{forward.3} parent=1 // pred_region
      _
    $region21: #{forward.3} parent=1 // pred_fallthru
      _
    %v21 = vld [vmem:[%s0] sm:$0xff]
    %v22 = vld [vmem:[%s0 + $0x8] sm:$0xff]
    %v23 = vld [vmem:[%s0 + $0x10] sm:$0xff]
    %v24 = vld [vmem:[%s0 + $0x18] sm:$0xff]
    %v25 = vld [vmem:[%s1] sm:$0xff]
    %v26 = vld [vmem:[%s1 + $0x8] sm:$0xff]
    %v27 = vld [vmem:[%s1 + $0x10] sm:$0xff]
    %v28 = vld [vmem:[%s1 + $0x18] sm:$0xff]
    %v29 = vld [vmem:[%s1 + $0x20] sm:$0xff]
    %v30 = vld [vmem:[%s1 + $0x28] sm:$0xff]
    %v31 = vld [vmem:[%s1 + $0x30] sm:$0xff]
    %v32 = vld [vmem:[%s1 + $0x38] sm:$0xff]
    %v33 = vld [vmem:[%s1 + $0x40] sm:$0xff]
    %v34 = vld [vmem:[%s1 + $0x48] sm:$0xff]
    %v35 = vld [vmem:[%s1 + $0x50] sm:$0xff]
    %v36 = vld [vmem:[%s1 + $0x58] sm:$0xff]
    %v37 = vld [vmem:[%s1 + $0x60] sm:$0xff]
    %v38 = vld [vmem:[%s1 + $0x68] sm:$0xff]
    %v39 = vld [vmem:[%s1 + $0x70] sm:$0xff]
    %v40 = vld [vmem:[%s1 + $0x78] sm:$0xff]
    %v41 = vld [vmem:[%s1 + $0x80] sm:$0xff]
    %v42 = vld [vmem:[%s1 + $0x88] sm:$0xff]
    %v43 = vld [vmem:[%s1 + $0x90] sm:$0xff]
    %v44 = vld [vmem:[%s1 + $0x98] sm:$0xff]
    %v45 = vld [vmem:[%s1 + $0xa0] sm:$0xff]
    %v46 = vld [vmem:[%s1 + $0xa8] sm:$0xff]
    %v47 = vld [vmem:[%s1 + $0xb0] sm:$0xff]
    %v48 = vld [vmem:[%s1 + $0xb8] sm:$0xff]
    %v49 = vld [vmem:[%s1 + $0xc0] sm:$0xff]
    %v50 = vld [vmem:[%s1 + $0xc8] sm:$0xff]
    %v51 = vld [vmem:[%s1 + $0xd0] sm:$0xff]
    %v52 = vld [vmem:[%s1 + $0xd8] sm:$0xff]
    %v53 = vld [vmem:[%s1 + $0xe0] sm:$0xff]
    %v54 = vld [vmem:[%s1 + $0xe8] sm:$0xff]
    %v55 = vld [vmem:[%s1 + $0xf0] sm:$0xff]
    %v56 = vld [vmem:[%s1 + $0xf8] sm:$0xff]
    %v57 = vld [vmem:[%s1 + $0x100] sm:$0xff]
    %v58 = vld [vmem:[%s1 + $0x108] sm:$0xff]
    %v59 = vld [vmem:[%s1 + $0x110] sm:$0xff]
    %v60 = vld [vmem:[%s1 + $0x118] sm:$0xff]
    %v61 = vld [vmem:[%s1 + $0x120] sm:$0xff]
    %v62 = vld [vmem:[%s1 + $0x128] sm:$0xff]
    %v63 = vld [vmem:[%s1 + $0x130] sm:$0xff]
    %v64 = vld [vmem:[%s1 + $0x138] sm:$0xff]
    %v65 = vld [vmem:[%s1 + $0x140] sm:$0xff]
    %v66 = vld [vmem:[%s1 + $0x148] sm:$0xff]
    %v67 = vld [vmem:[%s1 + $0x150] sm:$0xff]
    %v68 = vld [vmem:[%s1 + $0x158] sm:$0xff]
    %v69 = vld [vmem:[%s1 + $0x160] sm:$0xff]
    %v70 = vld [vmem:[%s1 + $0x168] sm:$0xff]
    %v71 = vld [vmem:[%s1 + $0x170] sm:$0xff]
    %v72 = vld [vmem:[%s1 + $0x178] sm:$0xff]
    %v73 = vld [vmem:[%s1 + $0x180] sm:$0xff]
    %v74 = vld [vmem:[%s1 + $0x188] sm:$0xff]
    %v75 = vld [vmem:[%s1 + $0x190] sm:$0xff]
    %v76 = vld [vmem:[%s1 + $0x198] sm:$0xff]
    %v77 = vld [vmem:[%s1 + $0x1a0] sm:$0xff]
    %v78 = vld [vmem:[%s1 + $0x1a8] sm:$0xff]
    %v79 = vld [vmem:[%s1 + $0x1b0] sm:$0xff]
    %v80 = vld [vmem:[%s1 + $0x1b8] sm:$0xff]
    %v81 = vld [vmem:[%s1 + $0x1c0] sm:$0xff]
    %v82 = vld [vmem:[%s1 + $0x1c8] sm:$0xff]
    %v83 = vld [vmem:[%s1 + $0x1d0] sm:$0xff]
    %v84 = vld [vmem:[%s1 + $0x1d8] sm:$0xff]
    %v85 = vld [vmem:[%s1 + $0x1e0] sm:$0xff]
    %v86 = vld [vmem:[%s1 + $0x1e8] sm:$0xff]
    %v87 = vld [vmem:[%s1 + $0x1f0] sm:$0xff]
    %v88 = vld [vmem:[%s1 + $0x1f8] sm:$0xff]
    %v89 = vld [vmem:[%s1 + $0x200] sm:$0xff]
    %v90 = vld [vmem:[%s1 + $0x208] sm:$0xff]
    %v91 = vld [vmem:[%s1 + $0x210] sm:$0xff]
    %v92 = vld [vmem:[%s1 + $0x218] sm:$0xff]
    %v93 = vld [vmem:[%s1 + $0x220] sm:$0xff]
    %v94 = vld [vmem:[%s1 + $0x228] sm:$0xff]
    %v95 = vld [vmem:[%s1 + $0x230] sm:$0xff]
    %v96 = vld [vmem:[%s1 + $0x238] sm:$0xff]
    %v97 = vld [vmem:[%s1 + $0x240] sm:$0xff]
    %v98 = vld [vmem:[%s1 + $0x248] sm:$0xff]
    %v99 = vld [vmem:[%s1 + $0x250] sm:$0xff]
    %v100 = vld [vmem:[%s1 + $0x258] sm:$0xff]
    %v101 = vld [vmem:[%s1 + $0x260] sm:$0xff]
    %v102 = vld [vmem:[%s1 + $0x268] sm:$0xff]
    %v103 = vld [vmem:[%s1 + $0x270] sm:$0xff]
    %v104 = vld [vmem:[%s1 + $0x278] sm:$0xff]
    %v105 = vld [vmem:[%s1 + $0x280] sm:$0xff]
    %v106 = vld [vmem:[%s1 + $0x288] sm:$0xff]
    %v107 = vld [vmem:[%s1 + $0x290] sm:$0xff]
    %v108 = vld [vmem:[%s1 + $0x298] sm:$0xff]
    %v109 = vld [vmem:[%s1 + $0x2a0] sm:$0xff]
    %v110 = vld [vmem:[%s1 + $0x2a8] sm:$0xff]
    %v111 = vld [vmem:[%s1 + $0x2b0] sm:$0xff]
    %v112 = vld [vmem:[%s1 + $0x2b8] sm:$0xff]
    %v113 = vld [vmem:[%s1 + $0x2c0] sm:$0xff]
    %v114 = vld [vmem:[%s1 + $0x2c8] sm:$0xff]
    %v115 = vld [vmem:[%s1 + $0x2d0] sm:$0xff]
    %v116 = vld [vmem:[%s1 + $0x2d8] sm:$0xff]
    %v117 = vld [vmem:[%s1 + $0x2e0] sm:$0xff]
    %v118 = vld [vmem:[%s1 + $0x2e8] sm:$0xff]
    %v119 = vld [vmem:[%s1 + $0x2f0] sm:$0xff]
    %v120 = vld [vmem:[%s1 + $0x2f8] sm:$0xff]
    %v121 = vld [vmem:[%s1 + $0x300] sm:$0xff]
    %v122 = vld [vmem:[%s1 + $0x308] sm:$0xff]
    %v123 = vld [vmem:[%s1 + $0x310] sm:$0xff]
    %v124 = vld [vmem:[%s1 + $0x318] sm:$0xff]
    %v125 = vld [vmem:[%s1 + $0x320] sm:$0xff]
    %v126 = vld [vmem:[%s1 + $0x328] sm:$0xff]
    %v127 = vld [vmem:[%s1 + $0x330] sm:$0xff]
    %v128 = vld [vmem:[%s1 + $0x338] sm:$0xff]
    %v129 = vld [vmem:[%s1 + $0x340] sm:$0xff]
    %v130 = vld [vmem:[%s1 + $0x348] sm:$0xff]
    %v131 = vld [vmem:[%s1 + $0x350] sm:$0xff]
    %v132 = vld [vmem:[%s1 + $0x358] sm:$0xff]
    %v133 = vld [vmem:[%s1 + $0x360] sm:$0xff]
    %v134 = vld [vmem:[%s1 + $0x368] sm:$0xff]
    %v135 = vld [vmem:[%s1 + $0x370] sm:$0xff]
    %v136 = vld [vmem:[%s1 + $0x378] sm:$0xff]
    %v137 = vld [vmem:[%s1 + $0x380] sm:$0xff]
    %v138 = vld [vmem:[%s1 + $0x388] sm:$0xff]
    %v139 = vld [vmem:[%s1 + $0x390] sm:$0xff]
    %v140 = vld [vmem:[%s1 + $0x398] sm:$0xff]
    %v141 = vld [vmem:[%s1 + $0x3a0] sm:$0xff]
    %v142 = vld [vmem:[%s1 + $0x3a8] sm:$0xff]
    %v143 = vld [vmem:[%s1 + $0x3b0] sm:$0xff]
    %v144 = vld [vmem:[%s1 + $0x3b8] sm:$0xff]
    %v145 = vld [vmem:[%s1 + $0x3c0] sm:$0xff]
    %v146 = vld [vmem:[%s1 + $0x3c8] sm:$0xff]
    %v147 = vld [vmem:[%s1 + $0x3d0] sm:$0xff]
    %v148 = vld [vmem:[%s1 + $0x3d8] sm:$0xff]
    %v149 = vld [vmem:[%s1 + $0x3e0] sm:$0xff]
    %v150 = vld [vmem:[%s1 + $0x3e8] sm:$0xff]
    %v151 = vld [vmem:[%s1 + $0x3f0] sm:$0xff]
    %v152 = vld [vmem:[%s1 + $0x3f8] sm:$0xff]
    %v153 = vld [vmem:[%s1 + $0x400] sm:$0xff]
    %v154 = vld [vmem:[%s1 + $0x408] sm:$0xff]
    %v155 = vld [vmem:[%s1 + $0x410] sm:$0xff]
    %v156 = vld [vmem:[%s1 + $0x418] sm:$0xff]
    %v157 = vld [vmem:[%s1 + $0x420] sm:$0xff]
    %v158 = vld [vmem:[%s1 + $0x428] sm:$0xff]
    %v159 = vld [vmem:[%s1 + $0x430] sm:$0xff]
    %v160 = vld [vmem:[%s1 + $0x438] sm:$0xff]
    %v161 = vld [vmem:[%s1 + $0x440] sm:$0xff]
    %v162 = vld [vmem:[%s1 + $0x448] sm:$0xff]
    %v163 = vld [vmem:[%s1 + $0x450] sm:$0xff]
    %v164 = vld [vmem:[%s1 + $0x458] sm:$0xff]
    %v165 = vld [vmem:[%s1 + $0x460] sm:$0xff]
    %v166 = vld [vmem:[%s1 + $0x468] sm:$0xff]
    %v167 = vld [vmem:[%s1 + $0x470] sm:$0xff]
    %v168 = vld [vmem:[%s1 + $0x478] sm:$0xff]
    %v169 = vld [vmem:[%s1 + $0x480] sm:$0xff]
    %v170 = vld [vmem:[%s1 + $0x488] sm:$0xff]
    %v171 = vld [vmem:[%s1 + $0x490] sm:$0xff]
    %v172 = vld [vmem:[%s1 + $0x498] sm:$0xff]
    %v173 = vld [vmem:[%s1 + $0x4a0] sm:$0xff]
    %v174 = vld [vmem:[%s1 + $0x4a8] sm:$0xff]
    %v175 = vld [vmem:[%s1 + $0x4b0] sm:$0xff]
    %v176 = vld [vmem:[%s1 + $0x4b8] sm:$0xff]
    %v177 = vld [vmem:[%s1 + $0x4c0] sm:$0xff]
    %v178 = vld [vmem:[%s1 + $0x4c8] sm:$0xff]
    %v179 = vld [vmem:[%s1 + $0x4d0] sm:$0xff]
    %v180 = vld [vmem:[%s1 + $0x4d8] sm:$0xff]
    %v181 = vld [vmem:[%s1 + $0x4e0] sm:$0xff]
    %v182 = vld [vmem:[%s1 + $0x4e8] sm:$0xff]
    %v183 = vld [vmem:[%s1 + $0x4f0] sm:$0xff]
    %v184 = vld [vmem:[%s1 + $0x4f8] sm:$0xff]
    %v185 = vld [vmem:[%s1 + $0x500] sm:$0xff]
    %v186 = vld [vmem:[%s1 + $0x508] sm:$0xff]
    %v187 = vld [vmem:[%s1 + $0x510] sm:$0xff]
    %v188 = vld [vmem:[%s1 + $0x518] sm:$0xff]
    %v189 = vld [vmem:[%s1 + $0x520] sm:$0xff]
    %v190 = vld [vmem:[%s1 + $0x528] sm:$0xff]
    %v191 = vld [vmem:[%s1 + $0x530] sm:$0xff]
    %v192 = vld [vmem:[%s1 + $0x538] sm:$0xff]
    %v193 = vld [vmem:[%s1 + $0x540] sm:$0xff]
    %v194 = vld [vmem:[%s1 + $0x548] sm:$0xff]
    %v195 = vld [vmem:[%s1 + $0x550] sm:$0xff]
    %v196 = vld [vmem:[%s1 + $0x558] sm:$0xff]
    %v197 = vld [vmem:[%s1 + $0x560] sm:$0xff]
    %v198 = vld [vmem:[%s1 + $0x568] sm:$0xff]
    %v199 = vld [vmem:[%s1 + $0x570] sm:$0xff]
    %v200 = vld [vmem:[%s1 + $0x578] sm:$0xff]
    %v201 = vld [vmem:[%s1 + $0x580] sm:$0xff]
    %v202 = vld [vmem:[%s1 + $0x588] sm:$0xff]
    %v203 = vld [vmem:[%s1 + $0x590] sm:$0xff]
    %v204 = vld [vmem:[%s1 + $0x598] sm:$0xff]
    %v205 = vld [vmem:[%s1 + $0x5a0] sm:$0xff]
    %v206 = vld [vmem:[%s1 + $0x5a8] sm:$0xff]
    %v207 = vld [vmem:[%s1 + $0x5b0] sm:$0xff]
    %v208 = vld [vmem:[%s1 + $0x5b8] sm:$0xff]
    %v209 = vld [vmem:[%s1 + $0x5c0] sm:$0xff]
    %v210 = vld [vmem:[%s1 + $0x5c8] sm:$0xff]
    %v211 = vld [vmem:[%s1 + $0x5d0] sm:$0xff]
    %v212 = vld [vmem:[%s1 + $0x5d8] sm:$0xff]
    %v213 = vld [vmem:[%s1 + $0x5e0] sm:$0xff]
    %v214 = vld [vmem:[%s1 + $0x5e8] sm:$0xff]
    %v215 = vld [vmem:[%s1 + $0x5f0] sm:$0xff]
    %v216 = vld [vmem:[%s1 + $0x5f8] sm:$0xff]
    %v217 = vld [vmem:[%s1 + $0x600] sm:$0xff]
    %v218 = vld [vmem:[%s1 + $0x608] sm:$0xff]
    %v219 = vld [vmem:[%s1 + $0x610] sm:$0xff]
    %v220 = vld [vmem:[%s1 + $0x618] sm:$0xff]
    %v221 = vld [vmem:[%s1 + $0x620] sm:$0xff]
    %v222 = vld [vmem:[%s1 + $0x628] sm:$0xff]
    %v223 = vld [vmem:[%s1 + $0x630] sm:$0xff]
    %v224 = vld [vmem:[%s1 + $0x638] sm:$0xff]
    %v225 = vld [vmem:[%s1 + $0x640] sm:$0xff]
    %v226 = vld [vmem:[%s1 + $0x648] sm:$0xff]
    %v227 = vld [vmem:[%s1 + $0x650] sm:$0xff]
    %v228 = vld [vmem:[%s1 + $0x658] sm:$0xff]
    %v229 = vld [vmem:[%s1 + $0x660] sm:$0xff]
    %v230 = vld [vmem:[%s1 + $0x668] sm:$0xff]
    %v231 = vld [vmem:[%s1 + $0x670] sm:$0xff]
    %v232 = vld [vmem:[%s1 + $0x678] sm:$0xff]
    %v233 = vld [vmem:[%s1 + $0x680] sm:$0xff]
    %v234 = vld [vmem:[%s1 + $0x688] sm:$0xff]
    %v235 = vld [vmem:[%s1 + $0x690] sm:$0xff]
    %v236 = vld [vmem:[%s1 + $0x698] sm:$0xff]
    %v237 = vld [vmem:[%s1 + $0x6a0] sm:$0xff]
    %v238 = vld [vmem:[%s1 + $0x6a8] sm:$0xff]
    %v239 = vld [vmem:[%s1 + $0x6b0] sm:$0xff]
    %v240 = vld [vmem:[%s1 + $0x6b8] sm:$0xff]
    %v241 = vld [vmem:[%s1 + $0x6c0] sm:$0xff]
    %v242 = vld [vmem:[%s1 + $0x6c8] sm:$0xff]
    %v243 = vld [vmem:[%s1 + $0x6d0] sm:$0xff]
    %v244 = vld [vmem:[%s1 + $0x6d8] sm:$0xff]
    %v245 = vld [vmem:[%s1 + $0x6e0] sm:$0xff]
    %v246 = vld [vmem:[%s1 + $0x6e8] sm:$0xff]
    %v247 = vld [vmem:[%s1 + $0x6f0] sm:$0xff]
    %v248 = vld [vmem:[%s1 + $0x6f8] sm:$0xff]
    %v249 = vld [vmem:[%s1 + $0x700] sm:$0xff]
    %v250 = vld [vmem:[%s1 + $0x708] sm:$0xff]
    %v251 = vld [vmem:[%s1 + $0x710] sm:$0xff]
    %v252 = vld [vmem:[%s1 + $0x718] sm:$0xff]
    %v253 = vld [vmem:[%s1 + $0x720] sm:$0xff]
    %v254 = vld [vmem:[%s1 + $0x728] sm:$0xff]
    %v255 = vld [vmem:[%s1 + $0x730] sm:$0xff]
    %v256 = vld [vmem:[%s1 + $0x738] sm:$0xff]
    %v257 = vld [vmem:[%s1 + $0x740] sm:$0xff]
    %v258 = vld [vmem:[%s1 + $0x748] sm:$0xff]
    %v259 = vld [vmem:[%s1 + $0x750] sm:$0xff]
    %v260 = vld [vmem:[%s1 + $0x758] sm:$0xff]
    %v261 = vld [vmem:[%s1 + $0x760] sm:$0xff]
    %v262 = vld [vmem:[%s1 + $0x768] sm:$0xff]
    %v263 = vld [vmem:[%s1 + $0x770] sm:$0xff]
    %v264 = vld [vmem:[%s1 + $0x778] sm:$0xff]
    %v265 = vld [vmem:[%s1 + $0x780] sm:$0xff]
    %v266 = vld [vmem:[%s1 + $0x788] sm:$0xff]
    %v267 = vld [vmem:[%s1 + $0x790] sm:$0xff]
    %v268 = vld [vmem:[%s1 + $0x798] sm:$0xff]
    %v269 = vld [vmem:[%s1 + $0x7a0] sm:$0xff]
    %v270 = vld [vmem:[%s1 + $0x7a8] sm:$0xff]
    %v271 = vld [vmem:[%s1 + $0x7b0] sm:$0xff]
    %v272 = vld [vmem:[%s1 + $0x7b8] sm:$0xff]
    %v273 = vld [vmem:[%s1 + $0x7c0] sm:$0xff]
    %v274 = vld [vmem:[%s1 + $0x7c8] sm:$0xff]
    %v275 = vld [vmem:[%s1 + $0x7d0] sm:$0xff]
    %v276 = vld [vmem:[%s1 + $0x7d8] sm:$0xff]
    %v277 = vld [vmem:[%s1 + $0x7e0] sm:$0xff]
    %v278 = vld [vmem:[%s1 + $0x7e8] sm:$0xff]
    %v279 = vld [vmem:[%s1 + $0x7f0] sm:$0xff]
    %v280 = vld [vmem:[%s1 + $0x7f8] sm:$0xff]
    %v281 = vld [vmem:[%s2] sm:$0x1]
    %v283 = vlaneseq
    %v284 = vshrl.u32 %v283, 7
    %v285 = vsub.s32 0, %v284
    %v286 = vrot.slane %v281, %v285
    %v292 = vcombine.high %v21, %v21
    %v294 = vunpack.c.l.s4 1983009808
    %v295 = vunpack.c.0.s8 %v294
    %v296 = vlaneseq
    %v297 = vshrl.u32 %v296, 7
    %v298 = vsub.s32 %v295, %v297
    %v299 = vrot.slane %v21, %v298
    %v301 = vunpack.c.l.s4 1983009808
    %v302 = vunpack.c.0.s8 %v301
    %v303 = vlaneseq
    %v304 = vshrl.u32 %v303, 7
    %v305 = vsub.s32 %v302, %v304
    %v306 = vrot.slane %v292, %v305
    %v307 = vcombine.high %v299, %v299
    %v308 = vcombine.high %v306, %v306
    %v309 = vcombine.high %v22, %v22
    %v311 = vunpack.c.l.s4 1983009808
    %v312 = vunpack.c.0.s8 %v311
    %v313 = vlaneseq
    %v314 = vshrl.u32 %v313, 7
    %v315 = vsub.s32 %v312, %v314
    %v316 = vrot.slane %v22, %v315
    %v318 = vunpack.c.l.s4 1983009808
    %v319 = vunpack.c.0.s8 %v318
    %v320 = vlaneseq
    %v321 = vshrl.u32 %v320, 7
    %v322 = vsub.s32 %v319, %v321
    %v323 = vrot.slane %v309, %v322
    %v324 = vcombine.high %v316, %v316
    %v325 = vcombine.high %v323, %v323
    %v326 = vcombine.high %v23, %v23
    %v328 = vunpack.c.l.s4 1983009808
    %v329 = vunpack.c.0.s8 %v328
    %v330 = vlaneseq
    %v331 = vshrl.u32 %v330, 7
    %v332 = vsub.s32 %v329, %v331
    %v333 = vrot.slane %v23, %v332
    %v335 = vunpack.c.l.s4 1983009808
    %v336 = vunpack.c.0.s8 %v335
    %v337 = vlaneseq
    %v338 = vshrl.u32 %v337, 7
    %v339 = vsub.s32 %v336, %v338
    %v340 = vrot.slane %v326, %v339
    %v341 = vcombine.high %v333, %v333
    %v342 = vcombine.high %v340, %v340
    %v343 = vcombine.high %v24, %v24
    %v345 = vunpack.c.l.s4 1983009808
    %v346 = vunpack.c.0.s8 %v345
    %v347 = vlaneseq
    %v348 = vshrl.u32 %v347, 7
    %v349 = vsub.s32 %v346, %v348
    %v350 = vrot.slane %v24, %v349
    %v352 = vunpack.c.l.s4 1983009808
    %v353 = vunpack.c.0.s8 %v352
    %v354 = vlaneseq
    %v355 = vshrl.u32 %v354, 7
    %v356 = vsub.s32 %v353, %v355
    %v357 = vrot.slane %v343, %v356
    %v358 = vcombine.high %v350, %v350
    %v359 = vcombine.high %v357, %v357
    %376 = vmatprep.subr.mxu0 0.0
    %377 = vmatpush1.msra.mxu0 %v40
    %378 = vmatprep.subr.mxu0 0.0
    %379 = vmatpush1.msra.mxu0 %v39
    %380 = vmatprep.subr.mxu0 0.0
    %381 = vmatpush1.msra.mxu0 %v38
    %382 = vmatprep.subr.mxu0 0.0
    %383 = vmatpush1.msra.mxu0 %v37
    %384 = vmatprep.subr.mxu0 0.0
    %385 = vmatpush1.msra.mxu0 %v36
    %386 = vmatprep.subr.mxu0 0.0
    %387 = vmatpush1.msra.mxu0 %v35
    %388 = vmatprep.subr.mxu0 0.0
    %389 = vmatpush1.msra.mxu0 %v34
    %390 = vmatprep.subr.mxu0 0.0
    %391 = vmatpush1.msra.mxu0 %v33
    %392 = vmatprep.subr.mxu0 0.0
    %393 = vmatpush1.msra.mxu0 %v32
    %394 = vmatprep.subr.mxu0 0.0
    %395 = vmatpush1.msra.mxu0 %v31
    %396 = vmatprep.subr.mxu0 0.0
    %397 = vmatpush1.msra.mxu0 %v30
    %398 = vmatprep.subr.mxu0 0.0
    %399 = vmatpush1.msra.mxu0 %v29
    %400 = vmatprep.subr.mxu0 0.0
    %401 = vmatpush1.msra.mxu0 %v28
    %402 = vmatprep.subr.mxu0 0.0
    %403 = vmatpush1.msra.mxu0 %v27
    %404 = vmatprep.subr.mxu0 0.0
    %405 = vmatpush1.msra.mxu0 %v26
    %406 = vmatprep.subr.mxu0 0.0
    %407 = vmatpush1.msra.mxu0 %v25
    %408 = vmatprep.subr.mxu0 0.0
    %409 = vmatpush2.msra.mxu0 %v56
    %410 = vmatprep.subr.mxu0 0.0
    %411 = vmatpush2.msra.mxu0 %v55
    %412 = vmatprep.subr.mxu0 0.0
    %413 = vmatpush2.msra.mxu0 %v54
    %414 = vmatprep.subr.mxu0 0.0
    %415 = vmatpush2.msra.mxu0 %v53
    %416 = vmatprep.subr.mxu0 0.0
    %417 = vmatpush2.msra.mxu0 %v52
    %418 = vmatprep.subr.mxu0 0.0
    %419 = vmatpush2.msra.mxu0 %v51
    %420 = vmatprep.subr.mxu0 0.0
    %421 = vmatpush2.msra.mxu0 %v50
    %422 = vmatprep.subr.mxu0 0.0
    %423 = vmatpush2.msra.mxu0 %v49
    %424 = vmatprep.subr.mxu0 0.0
    %425 = vmatpush2.msra.mxu0 %v48
    %426 = vmatprep.subr.mxu0 0.0
    %427 = vmatpush2.msra.mxu0 %v47
    %428 = vmatprep.subr.mxu0 0.0
    %429 = vmatpush2.msra.mxu0 %v46
    %430 = vmatprep.subr.mxu0 0.0
    %431 = vmatpush2.msra.mxu0 %v45
    %432 = vmatprep.subr.mxu0 0.0
    %433 = vmatpush2.msra.mxu0 %v44
    %434 = vmatprep.subr.mxu0 0.0
    %435 = vmatpush2.msra.mxu0 %v43
    %436 = vmatprep.subr.mxu0 0.0
    %437 = vmatpush2.msra.mxu0 %v42
    %438 = vmatprep.subr.mxu0 0.0
    %439 = vmatpush2.msra.mxu0 %v41
    %440 = vmatprep.mubr.f32.mxu0 %v307
    %441 = vmatmul.mubr.f32.gmra.mxu0 %v299
    %v442 = vpop.f32.mrf.mxu0
    %v443 = vadd.f32 %v286, %v442
    %v444 = vpop.f32.mrf.mxu0
    %445 = vdwg.mxu0
    %446 = vmatprep.subr.mxu0 0.0
    %447 = vmatpush1.msra.mxu0 %v72
    %448 = vmatprep.subr.mxu0 0.0
    %449 = vmatpush1.msra.mxu0 %v71
    %450 = vmatprep.subr.mxu0 0.0
    %451 = vmatpush1.msra.mxu0 %v70
    %452 = vmatprep.subr.mxu0 0.0
    %453 = vmatpush1.msra.mxu0 %v69
    %454 = vmatprep.subr.mxu0 0.0
    %455 = vmatpush1.msra.mxu0 %v68
    %456 = vmatprep.subr.mxu0 0.0
    %457 = vmatpush1.msra.mxu0 %v67
    %458 = vmatprep.subr.mxu0 0.0
    %459 = vmatpush1.msra.mxu0 %v66
    %460 = vmatprep.subr.mxu0 0.0
    %461 = vmatpush1.msra.mxu0 %v65
    %462 = vmatprep.subr.mxu0 0.0
    %463 = vmatpush1.msra.mxu0 %v64
    %464 = vmatprep.subr.mxu0 0.0
    %465 = vmatpush1.msra.mxu0 %v63
    %466 = vmatprep.subr.mxu0 0.0
    %467 = vmatpush1.msra.mxu0 %v62
    %468 = vmatprep.subr.mxu0 0.0
    %469 = vmatpush1.msra.mxu0 %v61
    %470 = vmatprep.subr.mxu0 0.0
    %471 = vmatpush1.msra.mxu0 %v60
    %472 = vmatprep.subr.mxu0 0.0
    %473 = vmatpush1.msra.mxu0 %v59
    %474 = vmatprep.subr.mxu0 0.0
    %475 = vmatpush1.msra.mxu0 %v58
    %476 = vmatprep.subr.mxu0 0.0
    %477 = vmatpush1.msra.mxu0 %v57
    %478 = vmatprep.subr.mxu0 0.0
    %479 = vmatpush2.msra.mxu0 %v88
    %480 = vmatprep.subr.mxu0 0.0
    %481 = vmatpush2.msra.mxu0 %v87
    %482 = vmatprep.subr.mxu0 0.0
    %483 = vmatpush2.msra.mxu0 %v86
    %484 = vmatprep.subr.mxu0 0.0
    %485 = vmatpush2.msra.mxu0 %v85
    %486 = vmatprep.subr.mxu0 0.0
    %487 = vmatpush2.msra.mxu0 %v84
    %488 = vmatprep.subr.mxu0 0.0
    %489 = vmatpush2.msra.mxu0 %v83
    %490 = vmatprep.subr.mxu0 0.0
    %491 = vmatpush2.msra.mxu0 %v82
    %492 = vmatprep.subr.mxu0 0.0
    %493 = vmatpush2.msra.mxu0 %v81
    %494 = vmatprep.subr.mxu0 0.0
    %495 = vmatpush2.msra.mxu0 %v80
    %496 = vmatprep.subr.mxu0 0.0
    %497 = vmatpush2.msra.mxu0 %v79
    %498 = vmatprep.subr.mxu0 0.0
    %499 = vmatpush2.msra.mxu0 %v78
    %500 = vmatprep.subr.mxu0 0.0
    %501 = vmatpush2.msra.mxu0 %v77
    %502 = vmatprep.subr.mxu0 0.0
    %503 = vmatpush2.msra.mxu0 %v76
    %504 = vmatprep.subr.mxu0 0.0
    %505 = vmatpush2.msra.mxu0 %v75
    %506 = vmatprep.subr.mxu0 0.0
    %507 = vmatpush2.msra.mxu0 %v74
    %508 = vmatprep.subr.mxu0 0.0
    %509 = vmatpush2.msra.mxu0 %v73
    %510 = vmatprep.mubr.f32.mxu0 %v308
    %511 = vmatmul.mubr.f32.gmra.mxu0 %v306
    %v512 = vpop.f32.mrf.mxu0
    %v513 = vadd.f32 %v443, %v512
    %v514 = vpop.f32.mrf.mxu0
    %515 = vdwg.mxu0
    %516 = vmatprep.subr.mxu0 0.0
    %517 = vmatpush1.msra.mxu0 %v104
    %518 = vmatprep.subr.mxu0 0.0
    %519 = vmatpush1.msra.mxu0 %v103
    %520 = vmatprep.subr.mxu0 0.0
    %521 = vmatpush1.msra.mxu0 %v102
    %522 = vmatprep.subr.mxu0 0.0
    %523 = vmatpush1.msra.mxu0 %v101
    %524 = vmatprep.subr.mxu0 0.0
    %525 = vmatpush1.msra.mxu0 %v100
    %526 = vmatprep.subr.mxu0 0.0
    %527 = vmatpush1.msra.mxu0 %v99
    %528 = vmatprep.subr.mxu0 0.0
    %529 = vmatpush1.msra.mxu0 %v98
    %530 = vmatprep.subr.mxu0 0.0
    %531 = vmatpush1.msra.mxu0 %v97
    %532 = vmatprep.subr.mxu0 0.0
    %533 = vmatpush1.msra.mxu0 %v96
    %534 = vmatprep.subr.mxu0 0.0
    %535 = vmatpush1.msra.mxu0 %v95
    %536 = vmatprep.subr.mxu0 0.0
    %537 = vmatpush1.msra.mxu0 %v94
    %538 = vmatprep.subr.mxu0 0.0
    %539 = vmatpush1.msra.mxu0 %v93
    %540 = vmatprep.subr.mxu0 0.0
    %541 = vmatpush1.msra.mxu0 %v92
    %542 = vmatprep.subr.mxu0 0.0
    %543 = vmatpush1.msra.mxu0 %v91
    %544 = vmatprep.subr.mxu0 0.0
    %545 = vmatpush1.msra.mxu0 %v90
    %546 = vmatprep.subr.mxu0 0.0
    %547 = vmatpush1.msra.mxu0 %v89
    %548 = vmatprep.subr.mxu0 0.0
    %549 = vmatpush2.msra.mxu0 %v120
    %550 = vmatprep.subr.mxu0 0.0
    %551 = vmatpush2.msra.mxu0 %v119
    %552 = vmatprep.subr.mxu0 0.0
    %553 = vmatpush2.msra.mxu0 %v118
    %554 = vmatprep.subr.mxu0 0.0
    %555 = vmatpush2.msra.mxu0 %v117
    %556 = vmatprep.subr.mxu0 0.0
    %557 = vmatpush2.msra.mxu0 %v116
    %558 = vmatprep.subr.mxu0 0.0
    %559 = vmatpush2.msra.mxu0 %v115
    %560 = vmatprep.subr.mxu0 0.0
    %561 = vmatpush2.msra.mxu0 %v114
    %562 = vmatprep.subr.mxu0 0.0
    %563 = vmatpush2.msra.mxu0 %v113
    %564 = vmatprep.subr.mxu0 0.0
    %565 = vmatpush2.msra.mxu0 %v112
    %566 = vmatprep.subr.mxu0 0.0
    %567 = vmatpush2.msra.mxu0 %v111
    %568 = vmatprep.subr.mxu0 0.0
    %569 = vmatpush2.msra.mxu0 %v110
    %570 = vmatprep.subr.mxu0 0.0
    %571 = vmatpush2.msra.mxu0 %v109
    %572 = vmatprep.subr.mxu0 0.0
    %573 = vmatpush2.msra.mxu0 %v108
    %574 = vmatprep.subr.mxu0 0.0
    %575 = vmatpush2.msra.mxu0 %v107
    %576 = vmatprep.subr.mxu0 0.0
    %577 = vmatpush2.msra.mxu0 %v106
    %578 = vmatprep.subr.mxu0 0.0
    %579 = vmatpush2.msra.mxu0 %v105
    %580 = vmatprep.mubr.f32.mxu0 %v324
    %581 = vmatmul.mubr.f32.gmra.mxu0 %v316
    %v582 = vpop.f32.mrf.mxu0
    %v583 = vadd.f32 %v513, %v582
    %v584 = vpop.f32.mrf.mxu0
    %585 = vdwg.mxu0
    %586 = vmatprep.subr.mxu0 0.0
    %587 = vmatpush1.msra.mxu0 %v136
    %588 = vmatprep.subr.mxu0 0.0
    %589 = vmatpush1.msra.mxu0 %v135
    %590 = vmatprep.subr.mxu0 0.0
    %591 = vmatpush1.msra.mxu0 %v134
    %592 = vmatprep.subr.mxu0 0.0
    %593 = vmatpush1.msra.mxu0 %v133
    %594 = vmatprep.subr.mxu0 0.0
    %595 = vmatpush1.msra.mxu0 %v132
    %596 = vmatprep.subr.mxu0 0.0
    %597 = vmatpush1.msra.mxu0 %v131
    %598 = vmatprep.subr.mxu0 0.0
    %599 = vmatpush1.msra.mxu0 %v130
    %600 = vmatprep.subr.mxu0 0.0
    %601 = vmatpush1.msra.mxu0 %v129
    %602 = vmatprep.subr.mxu0 0.0
    %603 = vmatpush1.msra.mxu0 %v128
    %604 = vmatprep.subr.mxu0 0.0
    %605 = vmatpush1.msra.mxu0 %v127
    %606 = vmatprep.subr.mxu0 0.0
    %607 = vmatpush1.msra.mxu0 %v126
    %608 = vmatprep.subr.mxu0 0.0
    %609 = vmatpush1.msra.mxu0 %v125
    %610 = vmatprep.subr.mxu0 0.0
    %611 = vmatpush1.msra.mxu0 %v124
    %612 = vmatprep.subr.mxu0 0.0
    %613 = vmatpush1.msra.mxu0 %v123
    %614 = vmatprep.subr.mxu0 0.0
    %615 = vmatpush1.msra.mxu0 %v122
    %616 = vmatprep.subr.mxu0 0.0
    %617 = vmatpush1.msra.mxu0 %v121
    %618 = vmatprep.subr.mxu0 0.0
    %619 = vmatpush2.msra.mxu0 %v152
    %620 = vmatprep.subr.mxu0 0.0
    %621 = vmatpush2.msra.mxu0 %v151
    %622 = vmatprep.subr.mxu0 0.0
    %623 = vmatpush2.msra.mxu0 %v150
    %624 = vmatprep.subr.mxu0 0.0
    %625 = vmatpush2.msra.mxu0 %v149
    %626 = vmatprep.subr.mxu0 0.0
    %627 = vmatpush2.msra.mxu0 %v148
    %628 = vmatprep.subr.mxu0 0.0
    %629 = vmatpush2.msra.mxu0 %v147
    %630 = vmatprep.subr.mxu0 0.0
    %631 = vmatpush2.msra.mxu0 %v146
    %632 = vmatprep.subr.mxu0 0.0
    %633 = vmatpush2.msra.mxu0 %v145
    %634 = vmatprep.subr.mxu0 0.0
    %635 = vmatpush2.msra.mxu0 %v144
    %636 = vmatprep.subr.mxu0 0.0
    %637 = vmatpush2.msra.mxu0 %v143
    %638 = vmatprep.subr.mxu0 0.0
    %639 = vmatpush2.msra.mxu0 %v142
    %640 = vmatprep.subr.mxu0 0.0
    %641 = vmatpush2.msra.mxu0 %v141
    %642 = vmatprep.subr.mxu0 0.0
    %643 = vmatpush2.msra.mxu0 %v140
    %644 = vmatprep.subr.mxu0 0.0
    %645 = vmatpush2.msra.mxu0 %v139
    %646 = vmatprep.subr.mxu0 0.0
    %647 = vmatpush2.msra.mxu0 %v138
    %648 = vmatprep.subr.mxu0 0.0
    %649 = vmatpush2.msra.mxu0 %v137
    %650 = vmatprep.mubr.f32.mxu0 %v325
    %651 = vmatmul.mubr.f32.gmra.mxu0 %v323
    %v652 = vpop.f32.mrf.mxu0
    %v653 = vadd.f32 %v583, %v652
    %v654 = vpop.f32.mrf.mxu0
    %655 = vdwg.mxu0
    %656 = vmatprep.subr.mxu0 0.0
    %657 = vmatpush1.msra.mxu0 %v168
    %658 = vmatprep.subr.mxu0 0.0
    %659 = vmatpush1.msra.mxu0 %v167
    %660 = vmatprep.subr.mxu0 0.0
    %661 = vmatpush1.msra.mxu0 %v166
    %662 = vmatprep.subr.mxu0 0.0
    %663 = vmatpush1.msra.mxu0 %v165
    %664 = vmatprep.subr.mxu0 0.0
    %665 = vmatpush1.msra.mxu0 %v164
    %666 = vmatprep.subr.mxu0 0.0
    %667 = vmatpush1.msra.mxu0 %v163
    %668 = vmatprep.subr.mxu0 0.0
    %669 = vmatpush1.msra.mxu0 %v162
    %670 = vmatprep.subr.mxu0 0.0
    %671 = vmatpush1.msra.mxu0 %v161
    %672 = vmatprep.subr.mxu0 0.0
    %673 = vmatpush1.msra.mxu0 %v160
    %674 = vmatprep.subr.mxu0 0.0
    %675 = vmatpush1.msra.mxu0 %v159
    %676 = vmatprep.subr.mxu0 0.0
    %677 = vmatpush1.msra.mxu0 %v158
    %678 = vmatprep.subr.mxu0 0.0
    %679 = vmatpush1.msra.mxu0 %v157
    %680 = vmatprep.subr.mxu0 0.0
    %681 = vmatpush1.msra.mxu0 %v156
    %682 = vmatprep.subr.mxu0 0.0
    %683 = vmatpush1.msra.mxu0 %v155
    %684 = vmatprep.subr.mxu0 0.0
    %685 = vmatpush1.msra.mxu0 %v154
    %686 = vmatprep.subr.mxu0 0.0
    %687 = vmatpush1.msra.mxu0 %v153
    %688 = vmatprep.subr.mxu0 0.0
    %689 = vmatpush2.msra.mxu0 %v184
    %690 = vmatprep.subr.mxu0 0.0
    %691 = vmatpush2.msra.mxu0 %v183
    %692 = vmatprep.subr.mxu0 0.0
    %693 = vmatpush2.msra.mxu0 %v182
    %694 = vmatprep.subr.mxu0 0.0
    %695 = vmatpush2.msra.mxu0 %v181
    %696 = vmatprep.subr.mxu0 0.0
    %697 = vmatpush2.msra.mxu0 %v180
    %698 = vmatprep.subr.mxu0 0.0
    %699 = vmatpush2.msra.mxu0 %v179
    %700 = vmatprep.subr.mxu0 0.0
    %701 = vmatpush2.msra.mxu0 %v178
    %702 = vmatprep.subr.mxu0 0.0
    %703 = vmatpush2.msra.mxu0 %v177
    %704 = vmatprep.subr.mxu0 0.0
    %705 = vmatpush2.msra.mxu0 %v176
    %706 = vmatprep.subr.mxu0 0.0
    %707 = vmatpush2.msra.mxu0 %v175
    %708 = vmatprep.subr.mxu0 0.0
    %709 = vmatpush2.msra.mxu0 %v174
    %710 = vmatprep.subr.mxu0 0.0
    %711 = vmatpush2.msra.mxu0 %v173
    %712 = vmatprep.subr.mxu0 0.0
    %713 = vmatpush2.msra.mxu0 %v172
    %714 = vmatprep.subr.mxu0 0.0
    %715 = vmatpush2.msra.mxu0 %v171
    %716 = vmatprep.subr.mxu0 0.0
    %717 = vmatpush2.msra.mxu0 %v170
    %718 = vmatprep.subr.mxu0 0.0
    %719 = vmatpush2.msra.mxu0 %v169
    %720 = vmatprep.mubr.f32.mxu0 %v341
    %721 = vmatmul.mubr.f32.gmra.mxu0 %v333
    %v722 = vpop.f32.mrf.mxu0
    %v723 = vadd.f32 %v653, %v722
    %v724 = vpop.f32.mrf.mxu0
    %725 = vdwg.mxu0
    %726 = vmatprep.subr.mxu0 0.0
    %727 = vmatpush1.msra.mxu0 %v200
    %728 = vmatprep.subr.mxu0 0.0
    %729 = vmatpush1.msra.mxu0 %v199
    %730 = vmatprep.subr.mxu0 0.0
    %731 = vmatpush1.msra.mxu0 %v198
    %732 = vmatprep.subr.mxu0 0.0
    %733 = vmatpush1.msra.mxu0 %v197
    %734 = vmatprep.subr.mxu0 0.0
    %735 = vmatpush1.msra.mxu0 %v196
    %736 = vmatprep.subr.mxu0 0.0
    %737 = vmatpush1.msra.mxu0 %v195
    %738 = vmatprep.subr.mxu0 0.0
    %739 = vmatpush1.msra.mxu0 %v194
    %740 = vmatprep.subr.mxu0 0.0
    %741 = vmatpush1.msra.mxu0 %v193
    %742 = vmatprep.subr.mxu0 0.0
    %743 = vmatpush1.msra.mxu0 %v192
    %744 = vmatprep.subr.mxu0 0.0
    %745 = vmatpush1.msra.mxu0 %v191
    %746 = vmatprep.subr.mxu0 0.0
    %747 = vmatpush1.msra.mxu0 %v190
    %748 = vmatprep.subr.mxu0 0.0
    %749 = vmatpush1.msra.mxu0 %v189
    %750 = vmatprep.subr.mxu0 0.0
    %751 = vmatpush1.msra.mxu0 %v188
    %752 = vmatprep.subr.mxu0 0.0
    %753 = vmatpush1.msra.mxu0 %v187
    %754 = vmatprep.subr.mxu0 0.0
    %755 = vmatpush1.msra.mxu0 %v186
    %756 = vmatprep.subr.mxu0 0.0
    %757 = vmatpush1.msra.mxu0 %v185
    %758 = vmatprep.subr.mxu0 0.0
    %759 = vmatpush2.msra.mxu0 %v216
    %760 = vmatprep.subr.mxu0 0.0
    %761 = vmatpush2.msra.mxu0 %v215
    %762 = vmatprep.subr.mxu0 0.0
    %763 = vmatpush2.msra.mxu0 %v214
    %764 = vmatprep.subr.mxu0 0.0
    %765 = vmatpush2.msra.mxu0 %v213
    %766 = vmatprep.subr.mxu0 0.0
    %767 = vmatpush2.msra.mxu0 %v212
    %768 = vmatprep.subr.mxu0 0.0
    %769 = vmatpush2.msra.mxu0 %v211
    %770 = vmatprep.subr.mxu0 0.0
    %771 = vmatpush2.msra.mxu0 %v210
    %772 = vmatprep.subr.mxu0 0.0
    %773 = vmatpush2.msra.mxu0 %v209
    %774 = vmatprep.subr.mxu0 0.0
    %775 = vmatpush2.msra.mxu0 %v208
    %776 = vmatprep.subr.mxu0 0.0
    %777 = vmatpush2.msra.mxu0 %v207
    %778 = vmatprep.subr.mxu0 0.0
    %779 = vmatpush2.msra.mxu0 %v206
    %780 = vmatprep.subr.mxu0 0.0
    %781 = vmatpush2.msra.mxu0 %v205
    %782 = vmatprep.subr.mxu0 0.0
    %783 = vmatpush2.msra.mxu0 %v204
    %784 = vmatprep.subr.mxu0 0.0
    %785 = vmatpush2.msra.mxu0 %v203
    %786 = vmatprep.subr.mxu0 0.0
    %787 = vmatpush2.msra.mxu0 %v202
    %788 = vmatprep.subr.mxu0 0.0
    %789 = vmatpush2.msra.mxu0 %v201
    %790 = vmatprep.mubr.f32.mxu0 %v342
    %791 = vmatmul.mubr.f32.gmra.mxu0 %v340
    %v792 = vpop.f32.mrf.mxu0
    %v793 = vadd.f32 %v723, %v792
    %v794 = vpop.f32.mrf.mxu0
    %795 = vdwg.mxu0
    %796 = vmatprep.subr.mxu0 0.0
    %797 = vmatpush1.msra.mxu0 %v232
    %798 = vmatprep.subr.mxu0 0.0
    %799 = vmatpush1.msra.mxu0 %v231
    %800 = vmatprep.subr.mxu0 0.0
    %801 = vmatpush1.msra.mxu0 %v230
    %802 = vmatprep.subr.mxu0 0.0
    %803 = vmatpush1.msra.mxu0 %v229
    %804 = vmatprep.subr.mxu0 0.0
    %805 = vmatpush1.msra.mxu0 %v228
    %806 = vmatprep.subr.mxu0 0.0
    %807 = vmatpush1.msra.mxu0 %v227
    %808 = vmatprep.subr.mxu0 0.0
    %809 = vmatpush1.msra.mxu0 %v226
    %810 = vmatprep.subr.mxu0 0.0
    %811 = vmatpush1.msra.mxu0 %v225
    %812 = vmatprep.subr.mxu0 0.0
    %813 = vmatpush1.msra.mxu0 %v224
    %814 = vmatprep.subr.mxu0 0.0
    %815 = vmatpush1.msra.mxu0 %v223
    %816 = vmatprep.subr.mxu0 0.0
    %817 = vmatpush1.msra.mxu0 %v222
    %818 = vmatprep.subr.mxu0 0.0
    %819 = vmatpush1.msra.mxu0 %v221
    %820 = vmatprep.subr.mxu0 0.0
    %821 = vmatpush1.msra.mxu0 %v220
    %822 = vmatprep.subr.mxu0 0.0
    %823 = vmatpush1.msra.mxu0 %v219
    %824 = vmatprep.subr.mxu0 0.0
    %825 = vmatpush1.msra.mxu0 %v218
    %826 = vmatprep.subr.mxu0 0.0
    %827 = vmatpush1.msra.mxu0 %v217
    %828 = vmatprep.subr.mxu0 0.0
    %829 = vmatpush2.msra.mxu0 %v248
    %830 = vmatprep.subr.mxu0 0.0
    %831 = vmatpush2.msra.mxu0 %v247
    %832 = vmatprep.subr.mxu0 0.0
    %833 = vmatpush2.msra.mxu0 %v246
    %834 = vmatprep.subr.mxu0 0.0
    %835 = vmatpush2.msra.mxu0 %v245
    %836 = vmatprep.subr.mxu0 0.0
    %837 = vmatpush2.msra.mxu0 %v244
    %838 = vmatprep.subr.mxu0 0.0
    %839 = vmatpush2.msra.mxu0 %v243
    %840 = vmatprep.subr.mxu0 0.0
    %841 = vmatpush2.msra.mxu0 %v242
    %842 = vmatprep.subr.mxu0 0.0
    %843 = vmatpush2.msra.mxu0 %v241
    %844 = vmatprep.subr.mxu0 0.0
    %845 = vmatpush2.msra.mxu0 %v240
    %846 = vmatprep.subr.mxu0 0.0
    %847 = vmatpush2.msra.mxu0 %v239
    %848 = vmatprep.subr.mxu0 0.0
    %849 = vmatpush2.msra.mxu0 %v238
    %850 = vmatprep.subr.mxu0 0.0
    %851 = vmatpush2.msra.mxu0 %v237
    %852 = vmatprep.subr.mxu0 0.0
    %853 = vmatpush2.msra.mxu0 %v236
    %854 = vmatprep.subr.mxu0 0.0
    %855 = vmatpush2.msra.mxu0 %v235
    %856 = vmatprep.subr.mxu0 0.0
    %857 = vmatpush2.msra.mxu0 %v234
    %858 = vmatprep.subr.mxu0 0.0
    %859 = vmatpush2.msra.mxu0 %v233
    %860 = vmatprep.mubr.f32.mxu0 %v358
    %861 = vmatmul.mubr.f32.gmra.mxu0 %v350
    %v862 = vpop.f32.mrf.mxu0
    %v863 = vadd.f32 %v793, %v862
    %v864 = vpop.f32.mrf.mxu0
    %865 = vdwg.mxu0
    %866 = vmatprep.subr.mxu0 0.0
    %867 = vmatpush1.msra.mxu0 %v264
    %868 = vmatprep.subr.mxu0 0.0
    %869 = vmatpush1.msra.mxu0 %v263
    %870 = vmatprep.subr.mxu0 0.0
    %871 = vmatpush1.msra.mxu0 %v262
    %872 = vmatprep.subr.mxu0 0.0
    %873 = vmatpush1.msra.mxu0 %v261
    %874 = vmatprep.subr.mxu0 0.0
    %875 = vmatpush1.msra.mxu0 %v260
    %876 = vmatprep.subr.mxu0 0.0
    %877 = vmatpush1.msra.mxu0 %v259
    %878 = vmatprep.subr.mxu0 0.0
    %879 = vmatpush1.msra.mxu0 %v258
    %880 = vmatprep.subr.mxu0 0.0
    %881 = vmatpush1.msra.mxu0 %v257
    %882 = vmatprep.subr.mxu0 0.0
    %883 = vmatpush1.msra.mxu0 %v256
    %884 = vmatprep.subr.mxu0 0.0
    %885 = vmatpush1.msra.mxu0 %v255
    %886 = vmatprep.subr.mxu0 0.0
    %887 = vmatpush1.msra.mxu0 %v254
    %888 = vmatprep.subr.mxu0 0.0
    %889 = vmatpush1.msra.mxu0 %v253
    %890 = vmatprep.subr.mxu0 0.0
    %891 = vmatpush1.msra.mxu0 %v252
    %892 = vmatprep.subr.mxu0 0.0
    %893 = vmatpush1.msra.mxu0 %v251
    %894 = vmatprep.subr.mxu0 0.0
    %895 = vmatpush1.msra.mxu0 %v250
    %896 = vmatprep.subr.mxu0 0.0
    %897 = vmatpush1.msra.mxu0 %v249
    %898 = vmatprep.subr.mxu0 0.0
    %899 = vmatpush2.msra.mxu0 %v280
    %900 = vmatprep.subr.mxu0 0.0
    %901 = vmatpush2.msra.mxu0 %v279
    %902 = vmatprep.subr.mxu0 0.0
    %903 = vmatpush2.msra.mxu0 %v278
    %904 = vmatprep.subr.mxu0 0.0
    %905 = vmatpush2.msra.mxu0 %v277
    %906 = vmatprep.subr.mxu0 0.0
    %907 = vmatpush2.msra.mxu0 %v276
    %908 = vmatprep.subr.mxu0 0.0
    %909 = vmatpush2.msra.mxu0 %v275
    %910 = vmatprep.subr.mxu0 0.0
    %911 = vmatpush2.msra.mxu0 %v274
    %912 = vmatprep.subr.mxu0 0.0
    %913 = vmatpush2.msra.mxu0 %v273
    %914 = vmatprep.subr.mxu0 0.0
    %915 = vmatpush2.msra.mxu0 %v272
    %916 = vmatprep.subr.mxu0 0.0
    %917 = vmatpush2.msra.mxu0 %v271
    %918 = vmatprep.subr.mxu0 0.0
    %919 = vmatpush2.msra.mxu0 %v270
    %920 = vmatprep.subr.mxu0 0.0
    %921 = vmatpush2.msra.mxu0 %v269
    %922 = vmatprep.subr.mxu0 0.0
    %923 = vmatpush2.msra.mxu0 %v268
    %924 = vmatprep.subr.mxu0 0.0
    %925 = vmatpush2.msra.mxu0 %v267
    %926 = vmatprep.subr.mxu0 0.0
    %927 = vmatpush2.msra.mxu0 %v266
    %928 = vmatprep.subr.mxu0 0.0
    %929 = vmatpush2.msra.mxu0 %v265
    %930 = vmatprep.mubr.f32.mxu0 %v359
    %931 = vmatmul.mubr.f32.gmra.mxu0 %v357
    %v932 = vpop.f32.mrf.mxu0
    %v933 = vadd.f32 %v863, %v932
    %v934 = vpop.f32.mrf.mxu0
    %935 = vdwg.mxu0
    %v936 = vmax.f32 %v933, 0.0
    %v937 = vld [vmem:[%s3] sm:$0xff]
    %v938 = vld [vmem:[%s3 + $0x8] sm:$0xff]
    %v939 = vld [vmem:[%s3 + $0x10] sm:$0xff]
    %v940 = vld [vmem:[%s3 + $0x18] sm:$0xff]
    %v941 = vld [vmem:[%s3 + $0x20] sm:$0xff]
    %v942 = vld [vmem:[%s3 + $0x28] sm:$0xff]
    %v943 = vld [vmem:[%s3 + $0x30] sm:$0xff]
    %v944 = vld [vmem:[%s3 + $0x38] sm:$0xff]
    %v945 = vld [vmem:[%s3 + $0x40] sm:$0xff]
    %v946 = vld [vmem:[%s3 + $0x48] sm:$0xff]
    %v947 = vld [vmem:[%s3 + $0x50] sm:$0xff]
    %v948 = vld [vmem:[%s3 + $0x58] sm:$0xff]
    %v949 = vld [vmem:[%s3 + $0x60] sm:$0xff]
    %v950 = vld [vmem:[%s3 + $0x68] sm:$0xff]
    %v951 = vld [vmem:[%s3 + $0x70] sm:$0xff]
    %v952 = vld [vmem:[%s3 + $0x78] sm:$0xff]
    %v953 = vld [vmem:[%s4] sm:$0x1]
    %v955 = vlaneseq
    %v956 = vshrl.u32 %v955, 7
    %v957 = vsub.s32 0, %v956
    %v958 = vrot.slane %v953, %v957
    %960 = vmatprep.subr.mxu0 0.0
    %961 = vmatpush1.msra.mxu0 %v952
    %962 = vmatprep.subr.mxu0 0.0
    %963 = vmatpush1.msra.mxu0 %v951
    %964 = vmatprep.subr.mxu0 0.0
    %965 = vmatpush1.msra.mxu0 %v950
    %966 = vmatprep.subr.mxu0 0.0
    %967 = vmatpush1.msra.mxu0 %v949
    %968 = vmatprep.subr.mxu0 0.0
    %969 = vmatpush1.msra.mxu0 %v948
    %970 = vmatprep.subr.mxu0 0.0
    %971 = vmatpush1.msra.mxu0 %v947
    %972 = vmatprep.subr.mxu0 0.0
    %973 = vmatpush1.msra.mxu0 %v946
    %974 = vmatprep.subr.mxu0 0.0
    %975 = vmatpush1.msra.mxu0 %v945
    %976 = vmatprep.subr.mxu0 0.0
    %977 = vmatpush1.msra.mxu0 %v944
    %978 = vmatprep.subr.mxu0 0.0
    %979 = vmatpush1.msra.mxu0 %v943
    %980 = vmatprep.subr.mxu0 0.0
    %981 = vmatpush1.msra.mxu0 %v942
    %982 = vmatprep.subr.mxu0 0.0
    %983 = vmatpush1.msra.mxu0 %v941
    %984 = vmatprep.subr.mxu0 0.0
    %985 = vmatpush1.msra.mxu0 %v940
    %986 = vmatprep.subr.mxu0 0.0
    %987 = vmatpush1.msra.mxu0 %v939
    %988 = vmatprep.subr.mxu0 0.0
    %989 = vmatpush1.msra.mxu0 %v938
    %990 = vmatprep.subr.mxu0 0.0
    %991 = vmatpush1.msra.mxu0 %v937
    %992 = vmatprep.subr.mxu0 0.0
    %993 = vmatpush2.msra.mxu0 0.0
    %994 = vmatprep.subr.mxu0 0.0
    %995 = vmatpush2.msra.mxu0 0.0
    %996 = vmatprep.subr.mxu0 0.0
    %997 = vmatpush2.msra.mxu0 0.0
    %998 = vmatprep.subr.mxu0 0.0
    %999 = vmatpush2.msra.mxu0 0.0
    %1000 = vmatprep.subr.mxu0 0.0
    %1001 = vmatpush2.msra.mxu0 0.0
    %1002 = vmatprep.subr.mxu0 0.0
    %1003 = vmatpush2.msra.mxu0 0.0
    %1004 = vmatprep.subr.mxu0 0.0
    %1005 = vmatpush2.msra.mxu0 0.0
    %1006 = vmatprep.subr.mxu0 0.0
    %1007 = vmatpush2.msra.mxu0 0.0
    %1008 = vmatprep.subr.mxu0 0.0
    %1009 = vmatpush2.msra.mxu0 0.0
    %1010 = vmatprep.subr.mxu0 0.0
    %1011 = vmatpush2.msra.mxu0 0.0
    %1012 = vmatprep.subr.mxu0 0.0
    %1013 = vmatpush2.msra.mxu0 0.0
    %1014 = vmatprep.subr.mxu0 0.0
    %1015 = vmatpush2.msra.mxu0 0.0
    %1016 = vmatprep.subr.mxu0 0.0
    %1017 = vmatpush2.msra.mxu0 0.0
    %1018 = vmatprep.subr.mxu0 0.0
    %1019 = vmatpush2.msra.mxu0 0.0
    %1020 = vmatprep.subr.mxu0 0.0
    %1021 = vmatpush2.msra.mxu0 0.0
    %1022 = vmatprep.subr.mxu0 0.0
    %1023 = vmatpush2.msra.mxu0 0.0
    %1024 = vmatprep.mubr.f32.mxu0 0.0
    %1025 = vmatmul.mubr.f32.gmra.mxu0 %v936
    %v1026 = vpop.f32.mrf.mxu0
    %v1027 = vadd.f32 %v958, %v1026
    %v1028 = vpop.f32.mrf.mxu0
    %1029 = vdwg.mxu0
    %vm1030 = vcmask 74752
    %1031 = vst.msk [vmem:[#allocation2] sm:$0x3] %vm1030, %v1027
    // Predicated region
    $region22: #{forward.3} parent=1 // pred_check
      _
    $region23: #{forward.3} parent=1 // pred_check_branch
      %1033 = sbr.rel (0) target = $region25
    $region24: #{forward.3} parent=1 // pred_region
      %s1035 = ssub.s32 32, 32
      %1036 = vsyncadd [#allocation3], %s1035
      %s1038 = sshll.u32 [#allocation2], 4
      %s1039 = int_to_ptr.vmem [resolvable:$true] %s1038
      %1041 = dma.vmem_to_hbm [thread:$0]  %s1039, 32, %s5, [#allocation3]
    $region25: #{forward.3} parent=1 // pred_fallthru
      _
    // Predicated region
    $region26: #{forward.3} parent=1 // pred_check
      _
    $region27: #{forward.3} parent=1 // pred_check_branch
      %1043 = sbr.rel (0) target = $region29
    $region28: #{forward.3} parent=1 // pred_region
      %1044 = dma.done [#allocation3], 32
    $region29: #{forward.3} parent=1 // pred_fallthru
      _
    %1045 = vsyncpa [#allocation3], 1

// kernel: forward.2
$region0: #{forward.2}
  #allocation0 [shape = 'u32[]', space=smem, size = 0x4, offset = 0x4, fixed_abs, tag = 'smem constant byte address 0x4 - core index']
  #allocation1 [shape = 'u32[144,128]{1,0:T(1,128)}', space=vmem, size = 0x12000, scoped, tag = 'internal scratch']
  %s0 = inlined_call_operand.vmem [shape: f32[2,256,128], index: 0, kind: input, shape index: {}]
  %s1 = inlined_call_operand.vmem [shape: f32[128,32], index: 1, kind: input, shape index: {}]
  %s2 = inlined_call_operand.vmem [shape: f32[1,32], index: 2, kind: input, shape index: {}]
  %s3 = inlined_call_operand.vmem [shape: f32[2,64,32], index: 3, kind: output, shape index: {}]
  %s4 = sld [smem:[#allocation0]]
  $region22: #{forward.2} parent=0
    _
  %s6 = ssub.s32 1, %s4
  %s7 = scalar_select 0, %s6, %s4
  // Predicated region
  $region2: #{forward.2} parent=0 // pred_check
    _
  $region3: #{forward.2} parent=0 // pred_check_branch
    %9 = sbr.rel (0) target = $region5
  $region4: #{forward.2} parent=0 // pred_region
    _
  $region5: #{forward.2} parent=0 // pred_fallthru
    _
  // Predicated region
  $region6: #{forward.2} parent=0 // pred_check
    _
  $region7: #{forward.2} parent=0 // pred_check_branch
    %11 = sbr.rel (0) target = $region9
  $region8: #{forward.2} parent=0 // pred_region
    _
  $region9: #{forward.2} parent=0 // pred_fallthru
    _
  // Predicated region
  $region10: #{forward.2} parent=0 // pred_check
    _
  $region11: #{forward.2} parent=0 // pred_check_branch
    %13 = sbr.rel (0) target = $region13
  $region12: #{forward.2} parent=0 // pred_region
    _
  $region13: #{forward.2} parent=0 // pred_fallthru
    _
  %v14 = vld [vmem:[%s0] sm:$0xff]
  %v15 = vld [vmem:[%s0 + $0x8] sm:$0xff]
  %v16 = vld [vmem:[%s0 + $0x10] sm:$0xff]
  %v17 = vld [vmem:[%s0 + $0x18] sm:$0xff]
  %v18 = vld [vmem:[%s0 + $0x20] sm:$0xff]
  %v19 = vld [vmem:[%s0 + $0x28] sm:$0xff]
  %v20 = vld [vmem:[%s0 + $0x30] sm:$0xff]
  %v21 = vld [vmem:[%s0 + $0x38] sm:$0xff]
  %v22 = vld [vmem:[%s0 + $0x40] sm:$0xff]
  %v23 = vld [vmem:[%s0 + $0x48] sm:$0xff]
  %v24 = vld [vmem:[%s0 + $0x50] sm:$0xff]
  %v25 = vld [vmem:[%s0 + $0x58] sm:$0xff]
  %v26 = vld [vmem:[%s0 + $0x60] sm:$0xff]
  %v27 = vld [vmem:[%s0 + $0x68] sm:$0xff]
  %v28 = vld [vmem:[%s0 + $0x70] sm:$0xff]
  %v29 = vld [vmem:[%s0 + $0x78] sm:$0xff]
  %v30 = vld [vmem:[%s0 + $0x80] sm:$0xff]
  %v31 = vld [vmem:[%s0 + $0x88] sm:$0xff]
  %v32 = vld [vmem:[%s0 + $0x90] sm:$0xff]
  %v33 = vld [vmem:[%s0 + $0x98] sm:$0xff]
  %v34 = vld [vmem:[%s0 + $0xa0] sm:$0xff]
  %v35 = vld [vmem:[%s0 + $0xa8] sm:$0xff]
  %v36 = vld [vmem:[%s0 + $0xb0] sm:$0xff]
  %v37 = vld [vmem:[%s0 + $0xb8] sm:$0xff]
  %v38 = vld [vmem:[%s0 + $0xc0] sm:$0xff]
  %v39 = vld [vmem:[%s0 + $0xc8] sm:$0xff]
  %v40 = vld [vmem:[%s0 + $0xd0] sm:$0xff]
  %v41 = vld [vmem:[%s0 + $0xd8] sm:$0xff]
  %v42 = vld [vmem:[%s0 + $0xe0] sm:$0xff]
  %v43 = vld [vmem:[%s0 + $0xe8] sm:$0xff]
  %v44 = vld [vmem:[%s0 + $0xf0] sm:$0xff]
  %v45 = vld [vmem:[%s0 + $0xf8] sm:$0xff]
  %v46 = vld [vmem:[%s0 + $0x100] sm:$0xff]
  %v47 = vld [vmem:[%s0 + $0x108] sm:$0xff]
  %v48 = vld [vmem:[%s0 + $0x110] sm:$0xff]
  %v49 = vld [vmem:[%s0 + $0x118] sm:$0xff]
  %v50 = vld [vmem:[%s0 + $0x120] sm:$0xff]
  %v51 = vld [vmem:[%s0 + $0x128] sm:$0xff]
  %v52 = vld [vmem:[%s0 + $0x130] sm:$0xff]
  %v53 = vld [vmem:[%s0 + $0x138] sm:$0xff]
  %v54 = vld [vmem:[%s0 + $0x140] sm:$0xff]
  %v55 = vld [vmem:[%s0 + $0x148] sm:$0xff]
  %v56 = vld [vmem:[%s0 + $0x150] sm:$0xff]
  %v57 = vld [vmem:[%s0 + $0x158] sm:$0xff]
  %v58 = vld [vmem:[%s0 + $0x160] sm:$0xff]
  %v59 = vld [vmem:[%s0 + $0x168] sm:$0xff]
  %v60 = vld [vmem:[%s0 + $0x170] sm:$0xff]
  %v61 = vld [vmem:[%s0 + $0x178] sm:$0xff]
  %v62 = vld [vmem:[%s0 + $0x180] sm:$0xff]
  %v63 = vld [vmem:[%s0 + $0x188] sm:$0xff]
  %v64 = vld [vmem:[%s0 + $0x190] sm:$0xff]
  %v65 = vld [vmem:[%s0 + $0x198] sm:$0xff]
  %v66 = vld [vmem:[%s0 + $0x1a0] sm:$0xff]
  %v67 = vld [vmem:[%s0 + $0x1a8] sm:$0xff]
  %v68 = vld [vmem:[%s0 + $0x1b0] sm:$0xff]
  %v69 = vld [vmem:[%s0 + $0x1b8] sm:$0xff]
  %v70 = vld [vmem:[%s0 + $0x1c0] sm:$0xff]
  %v71 = vld [vmem:[%s0 + $0x1c8] sm:$0xff]
  %v72 = vld [vmem:[%s0 + $0x1d0] sm:$0xff]
  %v73 = vld [vmem:[%s0 + $0x1d8] sm:$0xff]
  %v74 = vld [vmem:[%s0 + $0x1e0] sm:$0xff]
  %v75 = vld [vmem:[%s0 + $0x1e8] sm:$0xff]
  %v76 = vld [vmem:[%s0 + $0x1f0] sm:$0xff]
  %v77 = vld [vmem:[%s0 + $0x1f8] sm:$0xff]
  %v78 = vld [vmem:[%s1] sm:$0xff]
  %v79 = vld [vmem:[%s1 + $0x8] sm:$0xff]
  %v80 = vld [vmem:[%s1 + $0x10] sm:$0xff]
  %v81 = vld [vmem:[%s1 + $0x18] sm:$0xff]
  %v82 = vld [vmem:[%s1 + $0x20] sm:$0xff]
  %v83 = vld [vmem:[%s1 + $0x28] sm:$0xff]
  %v84 = vld [vmem:[%s1 + $0x30] sm:$0xff]
  %v85 = vld [vmem:[%s1 + $0x38] sm:$0xff]
  %v86 = vld [vmem:[%s1 + $0x40] sm:$0xff]
  %v87 = vld [vmem:[%s1 + $0x48] sm:$0xff]
  %v88 = vld [vmem:[%s1 + $0x50] sm:$0xff]
  %v89 = vld [vmem:[%s1 + $0x58] sm:$0xff]
  %v90 = vld [vmem:[%s1 + $0x60] sm:$0xff]
  %v91 = vld [vmem:[%s1 + $0x68] sm:$0xff]
  %v92 = vld [vmem:[%s1 + $0x70] sm:$0xff]
  %v93 = vld [vmem:[%s1 + $0x78] sm:$0xff]
  %v94 = vld [vmem:[%s2] sm:$0x1]
  %v96 = vlaneseq
  %v97 = vshrl.u32 %v96, 7
  %v98 = vsub.s32 0, %v97
  %v99 = vrot.slane %v94, %v98
  %101 = vmatprep.subr.mxu0 0.0
  %102 = vmatpush1.msra.mxu0 %v93
  %103 = vmatprep.subr.mxu0 0.0
  %104 = vmatpush1.msra.mxu0 %v92
  %105 = vmatprep.subr.mxu0 0.0
  %106 = vmatpush1.msra.mxu0 %v91
  %107 = vmatprep.subr.mxu0 0.0
  %108 = vmatpush1.msra.mxu0 %v90
  %109 = vmatprep.subr.mxu0 0.0
  %110 = vmatpush1.msra.mxu0 %v89
  %111 = vmatprep.subr.mxu0 0.0
  %112 = vmatpush1.msra.mxu0 %v88
  %113 = vmatprep.subr.mxu0 0.0
  %114 = vmatpush1.msra.mxu0 %v87
  %115 = vmatprep.subr.mxu0 0.0
  %116 = vmatpush1.msra.mxu0 %v86
  %117 = vmatprep.subr.mxu0 0.0
  %118 = vmatpush1.msra.mxu0 %v85
  %119 = vmatprep.subr.mxu0 0.0
  %120 = vmatpush1.msra.mxu0 %v84
  %121 = vmatprep.subr.mxu0 0.0
  %122 = vmatpush1.msra.mxu0 %v83
  %123 = vmatprep.subr.mxu0 0.0
  %124 = vmatpush1.msra.mxu0 %v82
  %125 = vmatprep.subr.mxu0 0.0
  %126 = vmatpush1.msra.mxu0 %v81
  %127 = vmatprep.subr.mxu0 0.0
  %128 = vmatpush1.msra.mxu0 %v80
  %129 = vmatprep.subr.mxu0 0.0
  %130 = vmatpush1.msra.mxu0 %v79
  %131 = vmatprep.subr.mxu0 0.0
  %132 = vmatpush1.msra.mxu0 %v78
  %133 = vmatprep.subr.mxu0 0.0
  %134 = vmatpush2.msra.mxu0 0.0
  %135 = vmatprep.subr.mxu0 0.0
  %136 = vmatpush2.msra.mxu0 0.0
  %137 = vmatprep.subr.mxu0 0.0
  %138 = vmatpush2.msra.mxu0 0.0
  %139 = vmatprep.subr.mxu0 0.0
  %140 = vmatpush2.msra.mxu0 0.0
  %141 = vmatprep.subr.mxu0 0.0
  %142 = vmatpush2.msra.mxu0 0.0
  %143 = vmatprep.subr.mxu0 0.0
  %144 = vmatpush2.msra.mxu0 0.0
  %145 = vmatprep.subr.mxu0 0.0
  %146 = vmatpush2.msra.mxu0 0.0
  %147 = vmatprep.subr.mxu0 0.0
  %148 = vmatpush2.msra.mxu0 0.0
  %149 = vmatprep.subr.mxu0 0.0
  %150 = vmatpush2.msra.mxu0 0.0
  %151 = vmatprep.subr.mxu0 0.0
  %152 = vmatpush2.msra.mxu0 0.0
  %153 = vmatprep.subr.mxu0 0.0
  %154 = vmatpush2.msra.mxu0 0.0
  %155 = vmatprep.subr.mxu0 0.0
  %156 = vmatpush2.msra.mxu0 0.0
  %157 = vmatprep.subr.mxu0 0.0
  %158 = vmatpush2.msra.mxu0 0.0
  %159 = vmatprep.subr.mxu0 0.0
  %160 = vmatpush2.msra.mxu0 0.0
  %161 = vmatprep.subr.mxu0 0.0
  %162 = vmatpush2.msra.mxu0 0.0
  %163 = vmatprep.subr.mxu0 0.0
  %164 = vmatpush2.msra.mxu0 0.0
  %165 = vmatprep.mubr.f32.mxu0 0.0
  %166 = vmatmul.mubr.f32.gmra.mxu0 %v14
  %v167 = vpop.f32.mrf.mxu0
  %v168 = vadd.f32 %v99, %v167
  %v169 = vpop.f32.mrf.mxu0
  %170 = vmatprep.mubr.f32.mxu0 0.0
  %171 = vmatmul.mubr.f32.gmra.mxu0 %v15
  %v172 = vpop.f32.mrf.mxu0
  %v173 = vadd.f32 %v99, %v172
  %v174 = vpop.f32.mrf.mxu0
  %175 = vmatprep.mubr.f32.mxu0 0.0
  %176 = vmatmul.mubr.f32.gmra.mxu0 %v16
  %v177 = vpop.f32.mrf.mxu0
  %v178 = vadd.f32 %v99, %v177
  %v179 = vpop.f32.mrf.mxu0
  %180 = vmatprep.mubr.f32.mxu0 0.0
  %181 = vmatmul.mubr.f32.gmra.mxu0 %v17
  %v182 = vpop.f32.mrf.mxu0
  %v183 = vadd.f32 %v99, %v182
  %v184 = vpop.f32.mrf.mxu0
  %185 = vmatprep.mubr.f32.mxu0 0.0
  %186 = vmatmul.mubr.f32.gmra.mxu0 %v18
  %v187 = vpop.f32.mrf.mxu0
  %v188 = vadd.f32 %v99, %v187
  %v189 = vpop.f32.mrf.mxu0
  %190 = vmatprep.mubr.f32.mxu0 0.0
  %191 = vmatmul.mubr.f32.gmra.mxu0 %v19
  %v192 = vpop.f32.mrf.mxu0
  %v193 = vadd.f32 %v99, %v192
  %v194 = vpop.f32.mrf.mxu0
  %195 = vmatprep.mubr.f32.mxu0 0.0
  %196 = vmatmul.mubr.f32.gmra.mxu0 %v20
  %v197 = vpop.f32.mrf.mxu0
  %v198 = vadd.f32 %v99, %v197
  %v199 = vpop.f32.mrf.mxu0
  %200 = vmatprep.mubr.f32.mxu0 0.0
  %201 = vmatmul.mubr.f32.gmra.mxu0 %v21
  %v202 = vpop.f32.mrf.mxu0
  %v203 = vadd.f32 %v99, %v202
  %v204 = vpop.f32.mrf.mxu0
  %205 = vmatprep.mubr.f32.mxu0 0.0
  %206 = vmatmul.mubr.f32.gmra.mxu0 %v22
  %v207 = vpop.f32.mrf.mxu0
  %v208 = vadd.f32 %v99, %v207
  %v209 = vpop.f32.mrf.mxu0
  %210 = vmatprep.mubr.f32.mxu0 0.0
  %211 = vmatmul.mubr.f32.gmra.mxu0 %v23
  %v212 = vpop.f32.mrf.mxu0
  %v213 = vadd.f32 %v99, %v212
  %v214 = vpop.f32.mrf.mxu0
  %215 = vmatprep.mubr.f32.mxu0 0.0
  %216 = vmatmul.mubr.f32.gmra.mxu0 %v24
  %v217 = vpop.f32.mrf.mxu0
  %v218 = vadd.f32 %v99, %v217
  %v219 = vpop.f32.mrf.mxu0
  %220 = vmatprep.mubr.f32.mxu0 0.0
  %221 = vmatmul.mubr.f32.gmra.mxu0 %v25
  %v222 = vpop.f32.mrf.mxu0
  %v223 = vadd.f32 %v99, %v222
  %v224 = vpop.f32.mrf.mxu0
  %225 = vmatprep.mubr.f32.mxu0 0.0
  %226 = vmatmul.mubr.f32.gmra.mxu0 %v26
  %v227 = vpop.f32.mrf.mxu0
  %v228 = vadd.f32 %v99, %v227
  %v229 = vpop.f32.mrf.mxu0
  %230 = vmatprep.mubr.f32.mxu0 0.0
  %231 = vmatmul.mubr.f32.gmra.mxu0 %v27
  %v232 = vpop.f32.mrf.mxu0
  %v233 = vadd.f32 %v99, %v232
  %v234 = vpop.f32.mrf.mxu0
  %235 = vmatprep.mubr.f32.mxu0 0.0
  %236 = vmatmul.mubr.f32.gmra.mxu0 %v28
  %v237 = vpop.f32.mrf.mxu0
  %v238 = vadd.f32 %v99, %v237
  %v239 = vpop.f32.mrf.mxu0
  %240 = vmatprep.mubr.f32.mxu0 0.0
  %241 = vmatmul.mubr.f32.gmra.mxu0 %v29
  %v242 = vpop.f32.mrf.mxu0
  %v243 = vadd.f32 %v99, %v242
  %v244 = vpop.f32.mrf.mxu0
  %245 = vmatprep.mubr.f32.mxu0 0.0
  %246 = vmatmul.mubr.f32.gmra.mxu0 %v30
  %v247 = vpop.f32.mrf.mxu0
  %v248 = vadd.f32 %v99, %v247
  %v249 = vpop.f32.mrf.mxu0
  %250 = vmatprep.mubr.f32.mxu0 0.0
  %251 = vmatmul.mubr.f32.gmra.mxu0 %v31
  %v252 = vpop.f32.mrf.mxu0
  %v253 = vadd.f32 %v99, %v252
  %v254 = vpop.f32.mrf.mxu0
  %255 = vmatprep.mubr.f32.mxu0 0.0
  %256 = vmatmul.mubr.f32.gmra.mxu0 %v32
  %v257 = vpop.f32.mrf.mxu0
  %v258 = vadd.f32 %v99, %v257
  %v259 = vpop.f32.mrf.mxu0
  %260 = vmatprep.mubr.f32.mxu0 0.0
  %261 = vmatmul.mubr.f32.gmra.mxu0 %v33
  %v262 = vpop.f32.mrf.mxu0
  %v263 = vadd.f32 %v99, %v262
  %v264 = vpop.f32.mrf.mxu0
  %265 = vmatprep.mubr.f32.mxu0 0.0
  %266 = vmatmul.mubr.f32.gmra.mxu0 %v34
  %v267 = vpop.f32.mrf.mxu0
  %v268 = vadd.f32 %v99, %v267
  %v269 = vpop.f32.mrf.mxu0
  %270 = vmatprep.mubr.f32.mxu0 0.0
  %271 = vmatmul.mubr.f32.gmra.mxu0 %v35
  %v272 = vpop.f32.mrf.mxu0
  %v273 = vadd.f32 %v99, %v272
  %v274 = vpop.f32.mrf.mxu0
  %275 = vmatprep.mubr.f32.mxu0 0.0
  %276 = vmatmul.mubr.f32.gmra.mxu0 %v36
  %v277 = vpop.f32.mrf.mxu0
  %v278 = vadd.f32 %v99, %v277
  %v279 = vpop.f32.mrf.mxu0
  %280 = vmatprep.mubr.f32.mxu0 0.0
  %281 = vmatmul.mubr.f32.gmra.mxu0 %v37
  %v282 = vpop.f32.mrf.mxu0
  %v283 = vadd.f32 %v99, %v282
  %v284 = vpop.f32.mrf.mxu0
  %285 = vmatprep.mubr.f32.mxu0 0.0
  %286 = vmatmul.mubr.f32.gmra.mxu0 %v38
  %v287 = vpop.f32.mrf.mxu0
  %v288 = vadd.f32 %v99, %v287
  %v289 = vpop.f32.mrf.mxu0
  %290 = vmatprep.mubr.f32.mxu0 0.0
  %291 = vmatmul.mubr.f32.gmra.mxu0 %v39
  %v292 = vpop.f32.mrf.mxu0
  %v293 = vadd.f32 %v99, %v292
  %v294 = vpop.f32.mrf.mxu0
  %295 = vmatprep.mubr.f32.mxu0 0.0
  %296 = vmatmul.mubr.f32.gmra.mxu0 %v40
  %v297 = vpop.f32.mrf.mxu0
  %v298 = vadd.f32 %v99, %v297
  %v299 = vpop.f32.mrf.mxu0
  %300 = vmatprep.mubr.f32.mxu0 0.0
  %301 = vmatmul.mubr.f32.gmra.mxu0 %v41
  %v302 = vpop.f32.mrf.mxu0
  %v303 = vadd.f32 %v99, %v302
  %v304 = vpop.f32.mrf.mxu0
  %305 = vmatprep.mubr.f32.mxu0 0.0
  %306 = vmatmul.mubr.f32.gmra.mxu0 %v42
  %v307 = vpop.f32.mrf.mxu0
  %v308 = vadd.f32 %v99, %v307
  %v309 = vpop.f32.mrf.mxu0
  %310 = vmatprep.mubr.f32.mxu0 0.0
  %311 = vmatmul.mubr.f32.gmra.mxu0 %v43
  %v312 = vpop.f32.mrf.mxu0
  %v313 = vadd.f32 %v99, %v312
  %v314 = vpop.f32.mrf.mxu0
  %315 = vmatprep.mubr.f32.mxu0 0.0
  %316 = vmatmul.mubr.f32.gmra.mxu0 %v44
  %v317 = vpop.f32.mrf.mxu0
  %v318 = vadd.f32 %v99, %v317
  %v319 = vpop.f32.mrf.mxu0
  %320 = vmatprep.mubr.f32.mxu0 0.0
  %321 = vmatmul.mubr.f32.gmra.mxu0 %v45
  %v322 = vpop.f32.mrf.mxu0
  %v323 = vadd.f32 %v99, %v322
  %v324 = vpop.f32.mrf.mxu0
  %325 = vmatprep.mubr.f32.mxu0 0.0
  %326 = vmatmul.mubr.f32.gmra.mxu0 %v46
  %v327 = vpop.f32.mrf.mxu0
  %v328 = vadd.f32 %v99, %v327
  %v329 = vpop.f32.mrf.mxu0
  %330 = vmatprep.mubr.f32.mxu0 0.0
  %331 = vmatmul.mubr.f32.gmra.mxu0 %v47
  %v332 = vpop.f32.mrf.mxu0
  %v333 = vadd.f32 %v99, %v332
  %v334 = vpop.f32.mrf.mxu0
  %335 = vmatprep.mubr.f32.mxu0 0.0
  %336 = vmatmul.mubr.f32.gmra.mxu0 %v48
  %v337 = vpop.f32.mrf.mxu0
  %v338 = vadd.f32 %v99, %v337
  %v339 = vpop.f32.mrf.mxu0
  %340 = vmatprep.mubr.f32.mxu0 0.0
  %341 = vmatmul.mubr.f32.gmra.mxu0 %v49
  %v342 = vpop.f32.mrf.mxu0
  %v343 = vadd.f32 %v99, %v342
  %v344 = vpop.f32.mrf.mxu0
  %345 = vmatprep.mubr.f32.mxu0 0.0
  %346 = vmatmul.mubr.f32.gmra.mxu0 %v50
  %v347 = vpop.f32.mrf.mxu0
  %v348 = vadd.f32 %v99, %v347
  %v349 = vpop.f32.mrf.mxu0
  %350 = vmatprep.mubr.f32.mxu0 0.0
  %351 = vmatmul.mubr.f32.gmra.mxu0 %v51
  %v352 = vpop.f32.mrf.mxu0
  %v353 = vadd.f32 %v99, %v352
  %v354 = vpop.f32.mrf.mxu0
  %355 = vmatprep.mubr.f32.mxu0 0.0
  %356 = vmatmul.mubr.f32.gmra.mxu0 %v52
  %v357 = vpop.f32.mrf.mxu0
  %v358 = vadd.f32 %v99, %v357
  %v359 = vpop.f32.mrf.mxu0
  %360 = vmatprep.mubr.f32.mxu0 0.0
  %361 = vmatmul.mubr.f32.gmra.mxu0 %v53
  %v362 = vpop.f32.mrf.mxu0
  %v363 = vadd.f32 %v99, %v362
  %v364 = vpop.f32.mrf.mxu0
  %365 = vmatprep.mubr.f32.mxu0 0.0
  %366 = vmatmul.mubr.f32.gmra.mxu0 %v54
  %v367 = vpop.f32.mrf.mxu0
  %v368 = vadd.f32 %v99, %v367
  %v369 = vpop.f32.mrf.mxu0
  %370 = vmatprep.mubr.f32.mxu0 0.0
  %371 = vmatmul.mubr.f32.gmra.mxu0 %v55
  %v372 = vpop.f32.mrf.mxu0
  %v373 = vadd.f32 %v99, %v372
  %v374 = vpop.f32.mrf.mxu0
  %375 = vmatprep.mubr.f32.mxu0 0.0
  %376 = vmatmul.mubr.f32.gmra.mxu0 %v56
  %v377 = vpop.f32.mrf.mxu0
  %v378 = vadd.f32 %v99, %v377
  %v379 = vpop.f32.mrf.mxu0
  %380 = vmatprep.mubr.f32.mxu0 0.0
  %381 = vmatmul.mubr.f32.gmra.mxu0 %v57
  %v382 = vpop.f32.mrf.mxu0
  %v383 = vadd.f32 %v99, %v382
  %v384 = vpop.f32.mrf.mxu0
  %385 = vmatprep.mubr.f32.mxu0 0.0
  %386 = vmatmul.mubr.f32.gmra.mxu0 %v58
  %v387 = vpop.f32.mrf.mxu0
  %v388 = vadd.f32 %v99, %v387
  %v389 = vpop.f32.mrf.mxu0
  %390 = vmatprep.mubr.f32.mxu0 0.0
  %391 = vmatmul.mubr.f32.gmra.mxu0 %v59
  %v392 = vpop.f32.mrf.mxu0
  %v393 = vadd.f32 %v99, %v392
  %v394 = vpop.f32.mrf.mxu0
  %395 = vmatprep.mubr.f32.mxu0 0.0
  %396 = vmatmul.mubr.f32.gmra.mxu0 %v60
  %v397 = vpop.f32.mrf.mxu0
  %v398 = vadd.f32 %v99, %v397
  %v399 = vpop.f32.mrf.mxu0
  %400 = vmatprep.mubr.f32.mxu0 0.0
  %401 = vmatmul.mubr.f32.gmra.mxu0 %v61
  %v402 = vpop.f32.mrf.mxu0
  %v403 = vadd.f32 %v99, %v402
  %v404 = vpop.f32.mrf.mxu0
  %405 = vmatprep.mubr.f32.mxu0 0.0
  %406 = vmatmul.mubr.f32.gmra.mxu0 %v62
  %v407 = vpop.f32.mrf.mxu0
  %v408 = vadd.f32 %v99, %v407
  %v409 = vpop.f32.mrf.mxu0
  %410 = vmatprep.mubr.f32.mxu0 0.0
  %411 = vmatmul.mubr.f32.gmra.mxu0 %v63
  %v412 = vpop.f32.mrf.mxu0
  %v413 = vadd.f32 %v99, %v412
  %v414 = vpop.f32.mrf.mxu0
  %415 = vmatprep.mubr.f32.mxu0 0.0
  %416 = vmatmul.mubr.f32.gmra.mxu0 %v64
  %v417 = vpop.f32.mrf.mxu0
  %v418 = vadd.f32 %v99, %v417
  %v419 = vpop.f32.mrf.mxu0
  %420 = vmatprep.mubr.f32.mxu0 0.0
  %421 = vmatmul.mubr.f32.gmra.mxu0 %v65
  %v422 = vpop.f32.mrf.mxu0
  %v423 = vadd.f32 %v99, %v422
  %v424 = vpop.f32.mrf.mxu0
  %425 = vmatprep.mubr.f32.mxu0 0.0
  %426 = vmatmul.mubr.f32.gmra.mxu0 %v66
  %v427 = vpop.f32.mrf.mxu0
  %v428 = vadd.f32 %v99, %v427
  %v429 = vpop.f32.mrf.mxu0
  %430 = vmatprep.mubr.f32.mxu0 0.0
  %431 = vmatmul.mubr.f32.gmra.mxu0 %v67
  %v432 = vpop.f32.mrf.mxu0
  %v433 = vadd.f32 %v99, %v432
  %v434 = vpop.f32.mrf.mxu0
  %435 = vmatprep.mubr.f32.mxu0 0.0
  %436 = vmatmul.mubr.f32.gmra.mxu0 %v68
  %v437 = vpop.f32.mrf.mxu0
  %v438 = vadd.f32 %v99, %v437
  %v439 = vpop.f32.mrf.mxu0
  %440 = vmatprep.mubr.f32.mxu0 0.0
  %441 = vmatmul.mubr.f32.gmra.mxu0 %v69
  %v442 = vpop.f32.mrf.mxu0
  %v443 = vadd.f32 %v99, %v442
  %v444 = vpop.f32.mrf.mxu0
  %445 = vmatprep.mubr.f32.mxu0 0.0
  %446 = vmatmul.mubr.f32.gmra.mxu0 %v70
  %v447 = vpop.f32.mrf.mxu0
  %v448 = vadd.f32 %v99, %v447
  %v449 = vpop.f32.mrf.mxu0
  %450 = vmatprep.mubr.f32.mxu0 0.0
  %451 = vmatmul.mubr.f32.gmra.mxu0 %v71
  %v452 = vpop.f32.mrf.mxu0
  %v453 = vadd.f32 %v99, %v452
  %v454 = vpop.f32.mrf.mxu0
  %455 = vmatprep.mubr.f32.mxu0 0.0
  %456 = vmatmul.mubr.f32.gmra.mxu0 %v72
  %v457 = vpop.f32.mrf.mxu0
  %v458 = vadd.f32 %v99, %v457
  %v459 = vpop.f32.mrf.mxu0
  %460 = vmatprep.mubr.f32.mxu0 0.0
  %461 = vmatmul.mubr.f32.gmra.mxu0 %v73
  %v462 = vpop.f32.mrf.mxu0
  %v463 = vadd.f32 %v99, %v462
  %v464 = vpop.f32.mrf.mxu0
  %465 = vmatprep.mubr.f32.mxu0 0.0
  %466 = vmatmul.mubr.f32.gmra.mxu0 %v74
  %v467 = vpop.f32.mrf.mxu0
  %v468 = vadd.f32 %v99, %v467
  %v469 = vpop.f32.mrf.mxu0
  %470 = vmatprep.mubr.f32.mxu0 0.0
  %471 = vmatmul.mubr.f32.gmra.mxu0 %v75
  %v472 = vpop.f32.mrf.mxu0
  %v473 = vadd.f32 %v99, %v472
  %v474 = vpop.f32.mrf.mxu0
  %475 = vmatprep.mubr.f32.mxu0 0.0
  %476 = vmatmul.mubr.f32.gmra.mxu0 %v76
  %v477 = vpop.f32.mrf.mxu0
  %v478 = vadd.f32 %v99, %v477
  %v479 = vpop.f32.mrf.mxu0
  %480 = vmatprep.mubr.f32.mxu0 0.0
  %481 = vmatmul.mubr.f32.gmra.mxu0 %v77
  %v482 = vpop.f32.mrf.mxu0
  %v483 = vadd.f32 %v99, %v482
  %v484 = vpop.f32.mrf.mxu0
  %485 = vdwg.mxu0
  %v486 = vmax.f32 %v168, 0.0
  %v487 = vmax.f32 %v173, 0.0
  %v488 = vmax.f32 %v178, 0.0
  %v489 = vmax.f32 %v183, 0.0
  %v490 = vmax.f32 %v188, 0.0
  %v491 = vmax.f32 %v193, 0.0
  %v492 = vmax.f32 %v198, 0.0
  %v493 = vmax.f32 %v203, 0.0
  %v494 = vmax.f32 %v208, 0.0
  %v495 = vmax.f32 %v213, 0.0
  %v496 = vmax.f32 %v218, 0.0
  %v497 = vmax.f32 %v223, 0.0
  %v498 = vmax.f32 %v228, 0.0
  %v499 = vmax.f32 %v233, 0.0
  %v500 = vmax.f32 %v238, 0.0
  %v501 = vmax.f32 %v243, 0.0
  %v502 = vmax.f32 %v248, 0.0
  %v503 = vmax.f32 %v253, 0.0
  %v504 = vmax.f32 %v258, 0.0
  %v505 = vmax.f32 %v263, 0.0
  %v506 = vmax.f32 %v268, 0.0
  %v507 = vmax.f32 %v273, 0.0
  %v508 = vmax.f32 %v278, 0.0
  %v509 = vmax.f32 %v283, 0.0
  %v510 = vmax.f32 %v288, 0.0
  %v511 = vmax.f32 %v293, 0.0
  %v512 = vmax.f32 %v298, 0.0
  %v513 = vmax.f32 %v303, 0.0
  %v514 = vmax.f32 %v308, 0.0
  %v515 = vmax.f32 %v313, 0.0
  %v516 = vmax.f32 %v318, 0.0
  %v517 = vmax.f32 %v323, 0.0
  %v518 = vmax.f32 %v328, 0.0
  %v519 = vmax.f32 %v333, 0.0
  %v520 = vmax.f32 %v338, 0.0
  %v521 = vmax.f32 %v343, 0.0
  %v522 = vmax.f32 %v348, 0.0
  %v523 = vmax.f32 %v353, 0.0
  %v524 = vmax.f32 %v358, 0.0
  %v525 = vmax.f32 %v363, 0.0
  %v526 = vmax.f32 %v368, 0.0
  %v527 = vmax.f32 %v373, 0.0
  %v528 = vmax.f32 %v378, 0.0
  %v529 = vmax.f32 %v383, 0.0
  %v530 = vmax.f32 %v388, 0.0
  %v531 = vmax.f32 %v393, 0.0
  %v532 = vmax.f32 %v398, 0.0
  %v533 = vmax.f32 %v403, 0.0
  %v534 = vmax.f32 %v408, 0.0
  %v535 = vmax.f32 %v413, 0.0
  %v536 = vmax.f32 %v418, 0.0
  %v537 = vmax.f32 %v423, 0.0
  %v538 = vmax.f32 %v428, 0.0
  %v539 = vmax.f32 %v433, 0.0
  %v540 = vmax.f32 %v438, 0.0
  %v541 = vmax.f32 %v443, 0.0
  %v542 = vmax.f32 %v448, 0.0
  %v543 = vmax.f32 %v453, 0.0
  %v544 = vmax.f32 %v458, 0.0
  %v545 = vmax.f32 %v463, 0.0
  %v546 = vmax.f32 %v468, 0.0
  %v547 = vmax.f32 %v473, 0.0
  %v548 = vmax.f32 %v478, 0.0
  %v549 = vmax.f32 %v483, 0.0
  %v550 = vmax.f32 %v486, %v494
  %v551 = vmax.f32 %v487, %v495
  %v552 = vmax.f32 %v488, %v496
  %v553 = vmax.f32 %v489, %v497
  %v554 = vmax.f32 %v490, %v498
  %v555 = vmax.f32 %v491, %v499
  %v556 = vmax.f32 %v492, %v500
  %v557 = vmax.f32 %v493, %v501
  %v558 = vmax.f32 %v518, %v526
  %v559 = vmax.f32 %v519, %v527
  %v560 = vmax.f32 %v520, %v528
  %v561 = vmax.f32 %v521, %v529
  %v562 = vmax.f32 %v522, %v530
  %v563 = vmax.f32 %v523, %v531
  %v564 = vmax.f32 %v524, %v532
  %v565 = vmax.f32 %v525, %v533
  %v566 = vmax.f32 %v502, %v510
  %v567 = vmax.f32 %v503, %v511
  %v568 = vmax.f32 %v504, %v512
  %v569 = vmax.f32 %v505, %v513
  %v570 = vmax.f32 %v506, %v514
  %v571 = vmax.f32 %v507, %v515
  %v572 = vmax.f32 %v508, %v516
  %v573 = vmax.f32 %v509, %v517
  %v574 = vmax.f32 %v534, %v542
  %v575 = vmax.f32 %v535, %v543
  %v576 = vmax.f32 %v536, %v544
  %v577 = vmax.f32 %v537, %v545
  %v578 = vmax.f32 %v538, %v546
  %v579 = vmax.f32 %v539, %v547
  %v580 = vmax.f32 %v540, %v548
  %v581 = vmax.f32 %v541, %v549
  %v582 = vmax.f32 %v550, %v566
  %v583 = vmax.f32 %v551, %v567
  %v584 = vmax.f32 %v552, %v568
  %v585 = vmax.f32 %v553, %v569
  %v586 = vmax.f32 %v554, %v570
  %v587 = vmax.f32 %v555, %v571
  %v588 = vmax.f32 %v556, %v572
  %v589 = vmax.f32 %v557, %v573
  %v590 = vmax.f32 %v558, %v574
  %v591 = vmax.f32 %v559, %v575
  %v592 = vmax.f32 %v560, %v576
  %v593 = vmax.f32 %v561, %v577
  %v594 = vmax.f32 %v562, %v578
  %v595 = vmax.f32 %v563, %v579
  %v596 = vmax.f32 %v564, %v580
  %v597 = vmax.f32 %v565, %v581
  %vm598 = vcmask 261120
  %599 = vst.msk [vmem:[%s3] sm:$0xff] %vm598, %v582
  %600 = vst.msk [vmem:[%s3 + $0x8] sm:$0xff] %vm598, %v583
  %601 = vst.msk [vmem:[%s3 + $0x10] sm:$0xff] %vm598, %v584
  %602 = vst.msk [vmem:[%s3 + $0x18] sm:$0xff] %vm598, %v585
  %603 = vst.msk [vmem:[%s3 + $0x20] sm:$0xff] %vm598, %v586
  %604 = vst.msk [vmem:[%s3 + $0x28] sm:$0xff] %vm598, %v587
  %605 = vst.msk [vmem:[%s3 + $0x30] sm:$0xff] %vm598, %v588
  %606 = vst.msk [vmem:[%s3 + $0x38] sm:$0xff] %vm598, %v589
  %607 = vst.msk [vmem:[%s3 + $0x40] sm:$0xff] %vm598, %v590
  %608 = vst.msk [vmem:[%s3 + $0x48] sm:$0xff] %vm598, %v591
  %609 = vst.msk [vmem:[%s3 + $0x50] sm:$0xff] %vm598, %v592
  %610 = vst.msk [vmem:[%s3 + $0x58] sm:$0xff] %vm598, %v593
  %611 = vst.msk [vmem:[%s3 + $0x60] sm:$0xff] %vm598, %v594
  %612 = vst.msk [vmem:[%s3 + $0x68] sm:$0xff] %vm598, %v595
  %613 = vst.msk [vmem:[%s3 + $0x70] sm:$0xff] %vm598, %v596
  %614 = vst.msk [vmem:[%s3 + $0x78] sm:$0xff] %vm598, %v597
  // Predicated region
  $region14: #{forward.2} parent=0 // pred_check
    _
  $region15: #{forward.2} parent=0 // pred_check_branch
    %616 = sbr.rel (0) target = $region17
  $region16: #{forward.2} parent=0 // pred_region
    _
  $region17: #{forward.2} parent=0 // pred_fallthru
    _
  // Predicated region
  $region18: #{forward.2} parent=0 // pred_check
    _
  $region19: #{forward.2} parent=0 // pred_check_branch
    %618 = sbr.rel (0) target = $region21
  $region20: #{forward.2} parent=0 // pred_region
    _
  $region21: #{forward.2} parent=0 // pred_fallthru
    _

</llo_original>
